<compile_context>
chip_gen: v6e
topology: v6e:2x2x1
jax: 0.10.0
libtpu: 0.0.40
codegen_flags: <defaults>
</compile_context>

<pallas_src>
import functools

import jax
import jax.numpy as jnp
from jax.experimental import pallas as pl
from jax.experimental.pallas import tpu as pltpu


def _mha_kernel(q_ref, k_ref, v_ref,
                wq_ref, wk_ref, wv_ref, wfc_ref,
                gamma_ref, beta_ref,
                *out_refs,
                n_head, eps, with_attn):
    out_ref = out_refs[0]

    Bb, Lq, Dm = q_ref.shape
    Lk = k_ref.shape[1]
    H = n_head
    G = Bb * H
    f32 = jnp.float32

    xq = q_ref[...].astype(f32)          # (Bb, Lq, Dm)
    xk = k_ref[...].astype(f32)          # (Bb, Lk, Dm)
    xv = v_ref[...].astype(f32)          # (Bb, Lk, Dm)

    # Replicate activations across heads / weights across the batch block and
    # fold (batch, head) into one leading axis G, so everything below is a
    # plain batched 3-D einsum (batch dim leading in every operand).
    def rep_x(x, L):
        return jnp.broadcast_to(x[:, None], (Bb, H, L, Dm)).reshape(G, L, Dm)

    def rep_w(w):
        d_in, d_out = w.shape[1], w.shape[2]
        return jnp.broadcast_to(w[None], (Bb, H, d_in, d_out)).reshape(G, d_in, d_out)

    xq_g = rep_x(xq, Lq)
    xk_g = rep_x(xk, Lk)
    xv_g = rep_x(xv, Lk)

    wq = rep_w(wq_ref[...])              # (G, Dm, dk) -- already scaled by 1/sqrt(dk)
    wk = rep_w(wk_ref[...])              # (G, Dm, dk)
    wv = rep_w(wv_ref[...])              # (G, Dm, dv)
    wfc = rep_w(wfc_ref[...])            # (G, dv, Dm)

    # All-head projections (no in-kernel weight transposes).
    q_h = jnp.einsum('gld,gdk->glk', xq_g, wq, preferred_element_type=f32)   # (G, Lq, dk)
    k_h = jnp.einsum('gld,gdk->glk', xk_g, wk, preferred_element_type=f32)   # (G, Lk, dk)
    v_h = jnp.einsum('gld,gdk->glk', xv_g, wv, preferred_element_type=f32)   # (G, Lk, dv)

    # Scaled dot-product attention for every (batch, head) pair at once.
    scores = jnp.einsum('gqd,gkd->gqk', q_h, k_h, preferred_element_type=f32)  # (G, Lq, Lk)
    m = jnp.max(scores, axis=-1, keepdims=True)
    p = jnp.exp(scores - m)
    denom = jnp.sum(p, axis=-1, keepdims=True)
    # Exact reciprocal keeps the tight (1e-5) attn tolerance; use approx=True
    # (EUP fast path) when a looser tolerance is acceptable.
    attn = p * pl.reciprocal(denom, approx=False)

    if with_attn:
        attn_ref = out_refs[1]
        attn_ref[...] = attn.reshape(Bb, H, Lq, Lk).astype(attn_ref.dtype)

    ctx = jnp.einsum('gqk,gkd->gqd', attn, v_h, preferred_element_type=f32)   # (G, Lq, dv)

    # Output projection, folded per head then reduced over heads:
    #   concat_h(ctx_h) @ fc.T == sum_h ctx_h @ fc_h
    y_g = jnp.einsum('gqv,gvm->gqm', ctx, wfc, preferred_element_type=f32)    # (G, Lq, Dm)
    y = jnp.sum(y_g.reshape(Bb, H, Lq, Dm), axis=1)                           # (Bb, Lq, Dm)

    # Dropout is identity (eval mode); residual add + LayerNorm(eps).
    y = y + xq
    mean = jnp.mean(y, axis=-1, keepdims=True)
    centered = y - mean
    var = jnp.mean(centered * centered, axis=-1, keepdims=True)
    normed = centered * jax.lax.rsqrt(var + eps)
    gamma = gamma_ref[...]               # (1, Dm)
    beta = beta_ref[...]                 # (1, Dm)
    out_ref[...] = (normed * gamma[None] + beta[None]).astype(out_ref.dtype)


def multi_head_attention(q, k, v, params, *, n_head, d_k, d_v, eps=1e-6,
                         batch_blocks=1, return_attn=True):
    """q, k, v: [B, L, d_model].

    Returns (out [B, Lq, Dm], attn [B, H, Lq, Lk] or None).
    batch_blocks: number of grid steps over the batch (1 for single-TC
    v5e/v6e; 2 on v7x to use both TensorCores via "parallel" semantics).
    """
    B, Lq, Dm = q.shape
    Lk = k.shape[1]
    Lv = v.shape[1]
    assert Lk == Lv
    assert B % batch_blocks == 0
    Bb = B // batch_blocks

    temperature = d_k ** 0.5
    # Host-side weight prep (free): split per head, transpose to (in, out)
    # layout so the kernel does plain x @ W, and fold the 1/sqrt(d_k)
    # attention scale into the query weights.
    wq_h = (params["w_qs"] / temperature).reshape(n_head, d_k, Dm).transpose(0, 2, 1)  # (H, Dm, dk)
    wk_h = params["w_ks"].reshape(n_head, d_k, Dm).transpose(0, 2, 1)                   # (H, Dm, dk)
    wv_h = params["w_vs"].reshape(n_head, d_v, Dm).transpose(0, 2, 1)                   # (H, Dm, dv)
    wfc_h = params["fc"].reshape(Dm, n_head, d_v).transpose(1, 2, 0)                    # (H, dv, Dm)
    gamma2d = params["gamma"].reshape(1, Dm)
    beta2d = params["beta"].reshape(1, Dm)

    kernel = functools.partial(_mha_kernel, n_head=n_head, eps=eps,
                               with_attn=return_attn)

    out_shapes = [jax.ShapeDtypeStruct((B, Lq, Dm), q.dtype)]
    out_specs = [pl.BlockSpec((Bb, Lq, Dm), lambda b: (b, 0, 0))]
    if return_attn:
        out_shapes.append(jax.ShapeDtypeStruct((B, n_head, Lq, Lk), jnp.float32))
        out_specs.append(pl.BlockSpec((Bb, n_head, Lq, Lk), lambda b: (b, 0, 0, 0)))

    grid_spec = pltpu.PrefetchScalarGridSpec(
        num_scalar_prefetch=0,
        grid=(batch_blocks,),
        in_specs=[
            pl.BlockSpec((Bb, Lq, Dm), lambda b: (b, 0, 0)),        # q
            pl.BlockSpec((Bb, Lk, Dm), lambda b: (b, 0, 0)),        # k
            pl.BlockSpec((Bb, Lv, Dm), lambda b: (b, 0, 0)),        # v
            pl.BlockSpec((n_head, Dm, d_k), lambda b: (0, 0, 0)),   # w_qs (pre-T, pre-scaled)
            pl.BlockSpec((n_head, Dm, d_k), lambda b: (0, 0, 0)),   # w_ks (pre-T)
            pl.BlockSpec((n_head, Dm, d_v), lambda b: (0, 0, 0)),   # w_vs (pre-T)
            pl.BlockSpec((n_head, d_v, Dm), lambda b: (0, 0, 0)),   # fc   (pre-T)
            pl.BlockSpec((1, Dm), lambda b: (0, 0)),                # gamma
            pl.BlockSpec((1, Dm), lambda b: (0, 0)),                # beta
        ],
        out_specs=out_specs,
    )

    results = pl.pallas_call(
        kernel,
        out_shape=tuple(out_shapes),
        grid_spec=grid_spec,
        compiler_params=pltpu.CompilerParams(
            dimension_semantics=("parallel",)),
    )(q, k, v, wq_h, wk_h, wv_h, wfc_h, gamma2d, beta2d)

    if return_attn:
        out, attn = results
        return out, attn
    (out,) = results
    return out, None


def reference_mha(q, k, v, params, *, n_head, d_k, d_v, eps=1e-6):
    """Pure-JAX reference mirroring the PyTorch module (eval mode)."""
    with jax.default_matmul_precision("float32"):
        B, Lq, Dm = q.shape
        Lk = k.shape[1]
        residual = q
        Q = (q @ params["w_qs"].T).reshape(B, Lq, n_head, d_k).transpose(0, 2, 1, 3)
        K = (k @ params["w_ks"].T).reshape(B, Lk, n_head, d_k).transpose(0, 2, 1, 3)
        V = (v @ params["w_vs"].T).reshape(B, Lk, n_head, d_v).transpose(0, 2, 1, 3)
        attn = jnp.einsum("bhqd,bhkd->bhqk", Q / (d_k ** 0.5), K)
        attn = jax.nn.softmax(attn, axis=-1)
        out = jnp.einsum("bhqk,bhkd->bhqd", attn, V)
        out = out.transpose(0, 2, 1, 3).reshape(B, Lq, n_head * d_v)
        out = out @ params["fc"].T
        out = out + residual
        mean = jnp.mean(out, axis=-1, keepdims=True)
        var = jnp.mean((out - mean) ** 2, axis=-1, keepdims=True)
        out = (out - mean) * jax.lax.rsqrt(var + eps)
        out = out * params["gamma"] + params["beta"]
        return out, attn


if __name__ == "__main__":
    # Shapes match multi_rate's attention block:
    #   MultiHeadAttention(n_head=2, d_model=conv_kernels=16, d_k=32, d_v=32)
    B, L, d_model = 2, 8, 16
    n_head, d_k, d_v = 2, 32, 32

    key = jax.random.PRNGKey(0)
    kq, kk, kv, kwq, kwk, kwv, kfc = jax.random.split(key, 7)

    q = jax.random.normal(kq, (B, L, d_model), dtype=jnp.float32)
    k = jax.random.normal(kk, (B, L, d_model), dtype=jnp.float32)
    v = jax.random.normal(kv, (B, L, d_model), dtype=jnp.float32)

    # Deterministic parameter init (nn.Linear weight shape is [out, in]).
    scale = 0.1
    params = {
        "w_qs": scale * jax.random.normal(kwq, (n_head * d_k, d_model), jnp.float32),
        "w_ks": scale * jax.random.normal(kwk, (n_head * d_k, d_model), jnp.float32),
        "w_vs": scale * jax.random.normal(kwv, (n_head * d_v, d_model), jnp.float32),
        "fc":   scale * jax.random.normal(kfc, (d_model, n_head * d_v), jnp.float32),
        "gamma": jnp.ones((d_model,), jnp.float32),   # LayerNorm weight init
        "beta":  jnp.zeros((d_model,), jnp.float32),  # LayerNorm bias init
    }

    ref_out, ref_attn = reference_mha(q, k, v, params,
                                      n_head=n_head, d_k=d_k, d_v=d_v)

    # 1) Single grid step (whole batch per step) -- default, best on v5e/v6e.
    out, attn = multi_head_attention(q, k, v, params, n_head=n_head,
                                     d_k=d_k, d_v=d_v, batch_blocks=1)
    out = jax.block_until_ready(out)
    attn = jax.block_until_ready(attn)
    assert out.shape == (B, L, d_model)
    assert attn.shape == (B, n_head, L, L)
    assert jnp.allclose(out, ref_out, atol=1e-4, rtol=1e-4)
    assert jnp.allclose(attn, ref_attn, atol=1e-5, rtol=1e-5)

    # 2) Two "parallel" grid steps (one per TensorCore on v7x).
    out2, attn2 = multi_head_attention(q, k, v, params, n_head=n_head,
                                       d_k=d_k, d_v=d_v, batch_blocks=2)
    out2 = jax.block_until_ready(out2)
    attn2 = jax.block_until_ready(attn2)
    assert jnp.allclose(out2, ref_out, atol=1e-4, rtol=1e-4)
    assert jnp.allclose(attn2, ref_attn, atol=1e-5, rtol=1e-5)

    # 3) Skip the attention-matrix output entirely when it is not needed.
    out3, attn3 = multi_head_attention(q, k, v, params, n_head=n_head,
                                       d_k=d_k, d_v=d_v, return_attn=False)
    out3 = jax.block_until_ready(out3)
    assert attn3 is None
    assert jnp.allclose(out3, ref_out, atol=1e-4, rtol=1e-4)

    print("KERNEL_OK")
</pallas_src>

<mosaic_0001>
module attributes {stable_mosaic.version = 11 : i64} {
  func.func @_mha_kernel(%arg0: i32, %arg1: memref<2x8x16xf32, #tpu.memory_space<vmem>>, %arg2: memref<2x8x16xf32, #tpu.memory_space<vmem>>, %arg3: memref<2x8x16xf32, #tpu.memory_space<vmem>>, %arg4: memref<2x16x32xf32, #tpu.memory_space<vmem>>, %arg5: memref<2x16x32xf32, #tpu.memory_space<vmem>>, %arg6: memref<2x16x32xf32, #tpu.memory_space<vmem>>, %arg7: memref<2x32x16xf32, #tpu.memory_space<vmem>>, %arg8: memref<1x16xf32, #tpu.memory_space<vmem>>, %arg9: memref<1x16xf32, #tpu.memory_space<vmem>>, %arg10: memref<2x8x16xf32, #tpu.memory_space<vmem>>, %arg11: memref<2x2x8x8xf32, #tpu.memory_space<vmem>>) attributes {dimension_semantics = [#tpu.dimension_semantics<parallel>], iteration_bounds = array<i64: 1>, scalar_prefetch = 0 : i64, scratch_operands = 0 : i64, tpu.core_type = #tpu.core_type<tc>, window_params = [{transform_indices = @transform_0, window_bounds = array<i64: 2, 8, 16>}, {transform_indices = @transform_1, window_bounds = array<i64: 2, 8, 16>}, {transform_indices = @transform_2, window_bounds = array<i64: 2, 8, 16>}, {pipeline_mode = #tpu.pipeline_mode<synchronous>, transform_indices = @transform_3, window_bounds = array<i64: 2, 16, 32>}, {pipeline_mode = #tpu.pipeline_mode<synchronous>, transform_indices = @transform_4, window_bounds = array<i64: 2, 16, 32>}, {pipeline_mode = #tpu.pipeline_mode<synchronous>, transform_indices = @transform_5, window_bounds = array<i64: 2, 16, 32>}, {pipeline_mode = #tpu.pipeline_mode<synchronous>, transform_indices = @transform_6, window_bounds = array<i64: 2, 32, 16>}, {pipeline_mode = #tpu.pipeline_mode<synchronous>, transform_indices = @transform_7, window_bounds = array<i64: 1, 16>}, {pipeline_mode = #tpu.pipeline_mode<synchronous>, transform_indices = @transform_8, window_bounds = array<i64: 1, 16>}, {transform_indices = @transform_9, window_bounds = array<i64: 2, 8, 16>}, {transform_indices = @transform_10, window_bounds = array<i64: 2, 2, 8, 8>}]} {
    %c0 = arith.constant 0 : index
    %c0_0 = arith.constant 0 : index
    %c0_1 = arith.constant 0 : index
    %0 = vector.load %arg1[%c0, %c0_0, %c0_1] : memref<2x8x16xf32, #tpu.memory_space<vmem>>, vector<2x8x16xf32>
    %c0_2 = arith.constant 0 : index
    %c0_3 = arith.constant 0 : index
    %c0_4 = arith.constant 0 : index
    %1 = vector.load %arg2[%c0_2, %c0_3, %c0_4] : memref<2x8x16xf32, #tpu.memory_space<vmem>>, vector<2x8x16xf32>
    %c0_5 = arith.constant 0 : index
    %c0_6 = arith.constant 0 : index
    %c0_7 = arith.constant 0 : index
    %2 = vector.load %arg3[%c0_5, %c0_6, %c0_7] : memref<2x8x16xf32, #tpu.memory_space<vmem>>, vector<2x8x16xf32>
    %3 = vector.shape_cast %0 : vector<2x8x16xf32> to vector<2x1x8x16xf32>
    %4 = vector.shape_cast %3 : vector<2x1x8x16xf32> to vector<2x1x8x16xf32>
    %5 = vector.broadcast %4 : vector<2x1x8x16xf32> to vector<2x2x8x16xf32>
    %6 = vector.shape_cast %5 : vector<2x2x8x16xf32> to vector<4x8x16xf32>
    %7 = vector.shape_cast %1 : vector<2x8x16xf32> to vector<2x1x8x16xf32>
    %8 = vector.shape_cast %7 : vector<2x1x8x16xf32> to vector<2x1x8x16xf32>
    %9 = vector.broadcast %8 : vector<2x1x8x16xf32> to vector<2x2x8x16xf32>
    %10 = vector.shape_cast %9 : vector<2x2x8x16xf32> to vector<4x8x16xf32>
    %11 = vector.shape_cast %2 : vector<2x8x16xf32> to vector<2x1x8x16xf32>
    %12 = vector.shape_cast %11 : vector<2x1x8x16xf32> to vector<2x1x8x16xf32>
    %13 = vector.broadcast %12 : vector<2x1x8x16xf32> to vector<2x2x8x16xf32>
    %14 = vector.shape_cast %13 : vector<2x2x8x16xf32> to vector<4x8x16xf32>
    %c0_8 = arith.constant 0 : index
    %c0_9 = arith.constant 0 : index
    %c0_10 = arith.constant 0 : index
    %15 = vector.load %arg4[%c0_8, %c0_9, %c0_10] : memref<2x16x32xf32, #tpu.memory_space<vmem>>, vector<2x16x32xf32>
    %16 = vector.shape_cast %15 : vector<2x16x32xf32> to vector<1x2x16x32xf32>
    %17 = vector.shape_cast %16 : vector<1x2x16x32xf32> to vector<1x2x16x32xf32>
    %18 = vector.broadcast %17 : vector<1x2x16x32xf32> to vector<2x2x16x32xf32>
    %19 = vector.shape_cast %18 : vector<2x2x16x32xf32> to vector<4x16x32xf32>
    %c0_11 = arith.constant 0 : index
    %c0_12 = arith.constant 0 : index
    %c0_13 = arith.constant 0 : index
    %20 = vector.load %arg5[%c0_11, %c0_12, %c0_13] : memref<2x16x32xf32, #tpu.memory_space<vmem>>, vector<2x16x32xf32>
    %21 = vector.shape_cast %20 : vector<2x16x32xf32> to vector<1x2x16x32xf32>
    %22 = vector.shape_cast %21 : vector<1x2x16x32xf32> to vector<1x2x16x32xf32>
    %23 = vector.broadcast %22 : vector<1x2x16x32xf32> to vector<2x2x16x32xf32>
    %24 = vector.shape_cast %23 : vector<2x2x16x32xf32> to vector<4x16x32xf32>
    %c0_14 = arith.constant 0 : index
    %c0_15 = arith.constant 0 : index
    %c0_16 = arith.constant 0 : index
    %25 = vector.load %arg6[%c0_14, %c0_15, %c0_16] : memref<2x16x32xf32, #tpu.memory_space<vmem>>, vector<2x16x32xf32>
    %26 = vector.shape_cast %25 : vector<2x16x32xf32> to vector<1x2x16x32xf32>
    %27 = vector.shape_cast %26 : vector<1x2x16x32xf32> to vector<1x2x16x32xf32>
    %28 = vector.broadcast %27 : vector<1x2x16x32xf32> to vector<2x2x16x32xf32>
    %29 = vector.shape_cast %28 : vector<2x2x16x32xf32> to vector<4x16x32xf32>
    %c0_17 = arith.constant 0 : index
    %c0_18 = arith.constant 0 : index
    %c0_19 = arith.constant 0 : index
    %30 = vector.load %arg7[%c0_17, %c0_18, %c0_19] : memref<2x32x16xf32, #tpu.memory_space<vmem>>, vector<2x32x16xf32>
    %31 = vector.shape_cast %30 : vector<2x32x16xf32> to vector<1x2x32x16xf32>
    %32 = vector.shape_cast %31 : vector<1x2x32x16xf32> to vector<1x2x32x16xf32>
    %33 = vector.broadcast %32 : vector<1x2x32x16xf32> to vector<2x2x32x16xf32>
    %34 = vector.shape_cast %33 : vector<2x2x32x16xf32> to vector<4x32x16xf32>
    "tpu.trace_start"() <{level = 10 : i32, message = "gld,gdk->glk"}> : () -> ()
    %cst = arith.constant dense<0.000000e+00> : vector<4x8x32xf32>
    %35 = tpu.matmul %6, %19, %cst {dimension_numbers = #tpu.dot_dimension_numbers<[2], [1], [1], [2], [0, 0, 0, 1, 1, 2], [0], [0]>} : vector<4x8x16xf32>, vector<4x16x32xf32>, vector<4x8x32xf32> -> vector<4x8x32xf32>
    %cst_20 = arith.constant dense<0.000000e+00> : vector<4x8x32xf32>
    %36 = tpu.matmul %10, %24, %cst_20 {dimension_numbers = #tpu.dot_dimension_numbers<[2], [1], [1], [2], [0, 0, 0, 1, 1, 2], [0], [0]>} : vector<4x8x16xf32>, vector<4x16x32xf32>, vector<4x8x32xf32> -> vector<4x8x32xf32>
    %cst_21 = arith.constant dense<0.000000e+00> : vector<4x8x32xf32>
    %37 = tpu.matmul %14, %29, %cst_21 {dimension_numbers = #tpu.dot_dimension_numbers<[2], [1], [1], [2], [0, 0, 0, 1, 1, 2], [0], [0]>} : vector<4x8x16xf32>, vector<4x16x32xf32>, vector<4x8x32xf32> -> vector<4x8x32xf32>
    "tpu.trace_stop"() : () -> ()
    "tpu.trace_start"() <{level = 10 : i32, message = "gqd,gkd->gqk"}> : () -> ()
    %cst_22 = arith.constant dense<0.000000e+00> : vector<4x8x8xf32>
    %38 = tpu.matmul %35, %36, %cst_22 {dimension_numbers = #tpu.dot_dimension_numbers<[2], [2], [1], [1], [0, 0, 0, 1, 1, 1], [0], [0]>} : vector<4x8x32xf32>, vector<4x8x32xf32>, vector<4x8x8xf32> -> vector<4x8x8xf32>
    "tpu.trace_stop"() : () -> ()
    %cst_23 = arith.constant dense<0xFF800000> : vector<4x8xf32>
    %39 = vector.multi_reduction <maximumf>, %38, %cst_23 [2] : vector<4x8x8xf32> to vector<4x8xf32>
    %40 = vector.shape_cast %39 : vector<4x8xf32> to vector<4x8x1xf32>
    %41 = vector.broadcast %40 : vector<4x8x1xf32> to vector<4x8x8xf32>
    %42 = arith.subf %38, %41 : vector<4x8x8xf32>
    %43 = math.exp %42 : vector<4x8x8xf32>
    %cst_24 = arith.constant dense<0.000000e+00> : vector<4x8xf32>
    %44 = vector.multi_reduction <add>, %43, %cst_24 [2] : vector<4x8x8xf32> to vector<4x8xf32>
    %45 = vector.shape_cast %44 : vector<4x8xf32> to vector<4x8x1xf32>
    %46 = tpu.reciprocal %45 : vector<4x8x1xf32> -> vector<4x8x1xf32>
    %47 = vector.broadcast %46 : vector<4x8x1xf32> to vector<4x8x8xf32>
    %48 = arith.mulf %43, %47 : vector<4x8x8xf32>
    %49 = vector.shape_cast %48 : vector<4x8x8xf32> to vector<2x2x8x8xf32>
    %c0_25 = arith.constant 0 : index
    %c0_26 = arith.constant 0 : index
    %c0_27 = arith.constant 0 : index
    %c0_28 = arith.constant 0 : index
    %50 = vector.load %arg11[%c0_25, %c0_26, %c0_27, %c0_28] : memref<2x2x8x8xf32, #tpu.memory_space<vmem>>, vector<2x2x8x8xf32>
    tpu.vector_store %arg11[%c0_25, %c0_26, %c0_27, %c0_28], %49 {strides = array<i32>} : memref<2x2x8x8xf32, #tpu.memory_space<vmem>>, vector<2x2x8x8xf32>,
    "tpu.trace_start"() <{level = 10 : i32, message = "gqk,gkd->gqd"}> : () -> ()
    %cst_29 = arith.constant dense<0.000000e+00> : vector<4x8x32xf32>
    %51 = tpu.matmul %48, %37, %cst_29 {dimension_numbers = #tpu.dot_dimension_numbers<[2], [1], [1], [2], [0, 0, 0, 1, 1, 2], [0], [0]>} : vector<4x8x8xf32>, vector<4x8x32xf32>, vector<4x8x32xf32> -> vector<4x8x32xf32>
    "tpu.trace_stop"() : () -> ()
    "tpu.trace_start"() <{level = 10 : i32, message = "gqv,gvm->gqm"}> : () -> ()
    %cst_30 = arith.constant dense<0.000000e+00> : vector<4x8x16xf32>
    %52 = tpu.matmul %51, %34, %cst_30 {dimension_numbers = #tpu.dot_dimension_numbers<[2], [1], [1], [2], [0, 0, 0, 1, 1, 2], [0], [0]>} : vector<4x8x32xf32>, vector<4x32x16xf32>, vector<4x8x16xf32> -> vector<4x8x16xf32>
    "tpu.trace_stop"() : () -> ()
    %53 = vector.shape_cast %52 : vector<4x8x16xf32> to vector<2x2x8x16xf32>
    %cst_31 = arith.constant dense<0.000000e+00> : vector<2x8x16xf32>
    %54 = vector.multi_reduction <add>, %53, %cst_31 [1] : vector<2x2x8x16xf32> to vector<2x8x16xf32>
    %55 = arith.addf %54, %0 : vector<2x8x16xf32>
    %cst_32 = arith.constant dense<0.000000e+00> : vector<2x8xf32>
    %56 = vector.multi_reduction <add>, %55, %cst_32 [2] : vector<2x8x16xf32> to vector<2x8xf32>
    %57 = vector.shape_cast %56 : vector<2x8xf32> to vector<2x8x1xf32>
    %cst_33 = arith.constant 1.600000e+01 : f32
    %58 = vector.broadcast %cst_33 : f32 to vector<2x8x1xf32>
    %59 = arith.divf %57, %58 : vector<2x8x1xf32>
    %60 = vector.broadcast %59 : vector<2x8x1xf32> to vector<2x8x16xf32>
    %61 = arith.subf %55, %60 : vector<2x8x16xf32>
    %62 = arith.mulf %61, %61 : vector<2x8x16xf32>
    %cst_34 = arith.constant dense<0.000000e+00> : vector<2x8xf32>
    %63 = vector.multi_reduction <add>, %62, %cst_34 [2] : vector<2x8x16xf32> to vector<2x8xf32>
    %64 = vector.shape_cast %63 : vector<2x8xf32> to vector<2x8x1xf32>
    %cst_35 = arith.constant 1.600000e+01 : f32
    %65 = vector.broadcast %cst_35 : f32 to vector<2x8x1xf32>
    %66 = arith.divf %64, %65 : vector<2x8x1xf32>
    %cst_36 = arith.constant 9.99999997E-7 : f32
    %67 = vector.broadcast %cst_36 : f32 to vector<2x8x1xf32>
    %68 = arith.addf %66, %67 : vector<2x8x1xf32>
    %69 = math.rsqrt %68 : vector<2x8x1xf32>
    %70 = vector.broadcast %69 : vector<2x8x1xf32> to vector<2x8x16xf32>
    %71 = arith.mulf %61, %70 : vector<2x8x16xf32>
    %c0_37 = arith.constant 0 : index
    %c0_38 = arith.constant 0 : index
    %72 = vector.load %arg8[%c0_37, %c0_38] : memref<1x16xf32, #tpu.memory_space<vmem>>, vector<1x16xf32>
    %c0_39 = arith.constant 0 : index
    %c0_40 = arith.constant 0 : index
    %73 = vector.load %arg9[%c0_39, %c0_40] : memref<1x16xf32, #tpu.memory_space<vmem>>, vector<1x16xf32>
    %74 = vector.shape_cast %72 : vector<1x16xf32> to vector<1x1x16xf32>
    %75 = vector.broadcast %74 : vector<1x1x16xf32> to vector<2x8x16xf32>
    %76 = arith.mulf %71, %75 : vector<2x8x16xf32>
    %77 = vector.shape_cast %73 : vector<1x16xf32> to vector<1x1x16xf32>
    %78 = vector.broadcast %77 : vector<1x1x16xf32> to vector<2x8x16xf32>
    %79 = arith.addf %76, %78 : vector<2x8x16xf32>
    %c0_41 = arith.constant 0 : index
    %c0_42 = arith.constant 0 : index
    %c0_43 = arith.constant 0 : index
    %80 = vector.load %arg10[%c0_41, %c0_42, %c0_43] : memref<2x8x16xf32, #tpu.memory_space<vmem>>, vector<2x8x16xf32>
    tpu.vector_store %arg10[%c0_41, %c0_42, %c0_43], %79 {strides = array<i32>} : memref<2x8x16xf32, #tpu.memory_space<vmem>>, vector<2x8x16xf32>,
    return
  }
  func.func @transform_0(%arg0: i32) -> (i32, i32, i32) {
    %c0_i32 = arith.constant 0 : i32
    %c0_i32_0 = arith.constant 0 : i32
    %c0_i32_1 = arith.constant 0 : i32
    return %arg0, %c0_i32, %c0_i32_0 : i32, i32, i32
  }
  func.func @transform_1(%arg0: i32) -> (i32, i32, i32) {
    %c0_i32 = arith.constant 0 : i32
    %c0_i32_0 = arith.constant 0 : i32
    %c0_i32_1 = arith.constant 0 : i32
    return %arg0, %c0_i32, %c0_i32_0 : i32, i32, i32
  }
  func.func @transform_2(%arg0: i32) -> (i32, i32, i32) {
    %c0_i32 = arith.constant 0 : i32
    %c0_i32_0 = arith.constant 0 : i32
    %c0_i32_1 = arith.constant 0 : i32
    return %arg0, %c0_i32, %c0_i32_0 : i32, i32, i32
  }
  func.func @transform_3(%arg0: i32) -> (i32, i32, i32) {
    %c0_i32 = arith.constant 0 : i32
    %c0_i32_0 = arith.constant 0 : i32
    %c0_i32_1 = arith.constant 0 : i32
    %c0_i32_2 = arith.constant 0 : i32
    return %c0_i32, %c0_i32_0, %c0_i32_1 : i32, i32, i32
  }
  func.func @transform_4(%arg0: i32) -> (i32, i32, i32) {
    %c0_i32 = arith.constant 0 : i32
    %c0_i32_0 = arith.constant 0 : i32
    %c0_i32_1 = arith.constant 0 : i32
    %c0_i32_2 = arith.constant 0 : i32
    return %c0_i32, %c0_i32_0, %c0_i32_1 : i32, i32, i32
  }
  func.func @transform_5(%arg0: i32) -> (i32, i32, i32) {
    %c0_i32 = arith.constant 0 : i32
    %c0_i32_0 = arith.constant 0 : i32
    %c0_i32_1 = arith.constant 0 : i32
    %c0_i32_2 = arith.constant 0 : i32
    return %c0_i32, %c0_i32_0, %c0_i32_1 : i32, i32, i32
  }
  func.func @transform_6(%arg0: i32) -> (i32, i32, i32) {
    %c0_i32 = arith.constant 0 : i32
    %c0_i32_0 = arith.constant 0 : i32
    %c0_i32_1 = arith.constant 0 : i32
    %c0_i32_2 = arith.constant 0 : i32
    return %c0_i32, %c0_i32_0, %c0_i32_1 : i32, i32, i32
  }
  func.func @transform_7(%arg0: i32) -> (i32, i32) {
    %c0_i32 = arith.constant 0 : i32
    %c0_i32_0 = arith.constant 0 : i32
    %c0_i32_1 = arith.constant 0 : i32
    return %c0_i32, %c0_i32_0 : i32, i32
  }
  func.func @transform_8(%arg0: i32) -> (i32, i32) {
    %c0_i32 = arith.constant 0 : i32
    %c0_i32_0 = arith.constant 0 : i32
    %c0_i32_1 = arith.constant 0 : i32
    return %c0_i32, %c0_i32_0 : i32, i32
  }
  func.func @transform_9(%arg0: i32) -> (i32, i32, i32) {
    %c0_i32 = arith.constant 0 : i32
    %c0_i32_0 = arith.constant 0 : i32
    %c0_i32_1 = arith.constant 0 : i32
    return %arg0, %c0_i32, %c0_i32_0 : i32, i32, i32
  }
  func.func @transform_10(%arg0: i32) -> (i32, i32, i32, i32) {
    %c0_i32 = arith.constant 0 : i32
    %c0_i32_0 = arith.constant 0 : i32
    %c0_i32_1 = arith.constant 0 : i32
    %c0_i32_2 = arith.constant 0 : i32
    return %arg0, %c0_i32, %c0_i32_0, %c0_i32_1 : i32, i32, i32, i32
  }
}

</mosaic_0001>

<llo_original>
// kernel: tpu_custom_call.1
$region0: #{tpu_custom_call.1}
  #allocation0 [shape = 'u32[]', space=smem, size = 0x4, offset = 0x4, fixed_abs, tag = 'smem constant byte address 0x4 - core index']
  #allocation1 [shape = 'u32[144,128]{1,0:T(1,128)}', space=vmem, size = 0x12000, scoped, tag = 'internal scratch']
  %s0 = inlined_call_operand.hbm [shape: f32[2,8,16], index: 0, kind: input, shape index: {}]
  %s1 = inlined_call_operand.hbm [shape: f32[2,8,16], index: 1, kind: input, shape index: {}]
  %s2 = inlined_call_operand.hbm [shape: f32[2,8,16], index: 2, kind: input, shape index: {}]
  %s3 = inlined_call_operand.vmem [shape: f32[2,16,32], index: 3, kind: input, shape index: {}]
  %s4 = inlined_call_operand.vmem [shape: f32[2,16,32], index: 4, kind: input, shape index: {}]
  %s5 = inlined_call_operand.vmem [shape: f32[2,16,32], index: 5, kind: input, shape index: {}]
  %s6 = inlined_call_operand.vmem [shape: f32[2,32,16], index: 6, kind: input, shape index: {}]
  %s7 = inlined_call_operand.vmem [shape: f32[1,16], index: 7, kind: input, shape index: {}]
  %s8 = inlined_call_operand.vmem [shape: f32[1,16], index: 8, kind: input, shape index: {}]
  %s9 = inlined_call_operand.hbm [shape: f32[2,8,16], index: 9, kind: output, shape index: {0}]
  %s10 = inlined_call_operand.hbm [shape: f32[2,2,8,8], index: 10, kind: output, shape index: {1}]
  %11 = xla_tuple %s9, %s10
  %s12 = sld [smem:[#allocation0]]
  $region66: #{tpu_custom_call.1} parent=0
    _
  %s14 = ssub.s32 1, %s12
  %s15 = scalar_select 0, %s14, %s12
  $region1: #{tpu_custom_call.1} parent=0
    #allocation2 [shape = 'u8[8192]{0}', space=vmem, size = 0x2000, scoped, tag = 'input window, operand 0, single buffered']
    #allocation3 [shape = 's32[1]{0}', space=sflag, size = 0x4, scoped, tag = 'scoped memory for tpu_custom_call.1']
    #allocation4 [shape = 's32[1]{0}', space=sflag, size = 0x4, scoped, tag = 'scoped memory for tpu_custom_call.1']
    #allocation5 [shape = 'u8[8192]{0}', space=vmem, size = 0x2000, scoped, tag = 'input window, operand 1, single buffered']
    #allocation6 [shape = 's32[1]{0}', space=sflag, size = 0x4, scoped, tag = 'scoped memory for tpu_custom_call.1']
    #allocation7 [shape = 'u8[8192]{0}', space=vmem, size = 0x2000, scoped, tag = 'input window, operand 2, single buffered']
    #allocation8 [shape = 'u8[8192]{0}', space=vmem, size = 0x2000, scoped, tag = 'output window, operand 0, single buffered']
    #allocation9 [shape = 'u8[16384]{0}', space=vmem, size = 0x4000, scoped, tag = 'output window, operand 1, single buffered']
    #allocation10 [shape = 's32[1]{0}', space=sflag, size = 0x4, scoped, tag = 'scoped memory for tpu_custom_call.1']
    %16 = vsyncpa [#allocation3], 0
    %17 = vsyncpa [#allocation6], 0
    %18 = vsyncpa [#allocation4], 0
    %19 = vsyncpa [#allocation10], 0
    // Predicated region
    $region2: #{tpu_custom_call.1} parent=1 // pred_check
      _
    $region3: #{tpu_custom_call.1} parent=1 // pred_check_branch
      %21 = sbr.rel (0) target = $region5
    $region4: #{tpu_custom_call.1} parent=1 // pred_region
      %s23 = ssub.s32 256, 256
      %24 = vsyncadd [#allocation3], %s23
      %s25 = sshll.u32 [#allocation2], 4
      %s26 = int_to_ptr.vmem [resolvable:$true] %s25
      %31 = dma.hbm_to_vmem [thread:$0]  %s0, 256, %s26, [#allocation3], 128, 128, 8
    $region5: #{tpu_custom_call.1} parent=1 // pred_fallthru
      _
    // Predicated region
    $region6: #{tpu_custom_call.1} parent=1 // pred_check
      _
    $region7: #{tpu_custom_call.1} parent=1 // pred_check_branch
      %33 = sbr.rel (0) target = $region9
    $region8: #{tpu_custom_call.1} parent=1 // pred_region
      %s35 = ssub.s32 256, 256
      %36 = vsyncadd [#allocation6], %s35
      %s37 = sshll.u32 [#allocation5], 4
      %s38 = int_to_ptr.vmem [resolvable:$true] %s37
      %43 = dma.hbm_to_vmem [thread:$0]  %s1, 256, %s38, [#allocation6], 128, 128, 8
    $region9: #{tpu_custom_call.1} parent=1 // pred_fallthru
      _
    // Predicated region
    $region10: #{tpu_custom_call.1} parent=1 // pred_check
      _
    $region11: #{tpu_custom_call.1} parent=1 // pred_check_branch
      %45 = sbr.rel (0) target = $region13
    $region12: #{tpu_custom_call.1} parent=1 // pred_region
      %s47 = ssub.s32 256, 256
      %48 = vsyncadd [#allocation6], %s47
      %s49 = sshll.u32 [#allocation7], 4
      %s50 = int_to_ptr.vmem [resolvable:$true] %s49
      %55 = dma.hbm_to_vmem [thread:$0]  %s2, 256, %s50, [#allocation6], 128, 128, 8
    $region13: #{tpu_custom_call.1} parent=1 // pred_fallthru
      _
    // Predicated region
    $region14: #{tpu_custom_call.1} parent=1 // pred_check
      _
    $region15: #{tpu_custom_call.1} parent=1 // pred_check_branch
      %57 = sbr.rel (0) target = $region17
    $region16: #{tpu_custom_call.1} parent=1 // pred_region
      _
    $region17: #{tpu_custom_call.1} parent=1 // pred_fallthru
      _
    // Predicated region
    $region18: #{tpu_custom_call.1} parent=1 // pred_check
      _
    $region19: #{tpu_custom_call.1} parent=1 // pred_check_branch
      %59 = sbr.rel (0) target = $region21
    $region20: #{tpu_custom_call.1} parent=1 // pred_region
      _
    $region21: #{tpu_custom_call.1} parent=1 // pred_fallthru
      _
    // Predicated region
    $region22: #{tpu_custom_call.1} parent=1 // pred_check
      _
    $region23: #{tpu_custom_call.1} parent=1 // pred_check_branch
      %61 = sbr.rel (0) target = $region25
    $region24: #{tpu_custom_call.1} parent=1 // pred_region
      _
    $region25: #{tpu_custom_call.1} parent=1 // pred_fallthru
      _
    // Predicated region
    $region26: #{tpu_custom_call.1} parent=1 // pred_check
      _
    $region27: #{tpu_custom_call.1} parent=1 // pred_check_branch
      %63 = sbr.rel (0) target = $region29
    $region28: #{tpu_custom_call.1} parent=1 // pred_region
      _
    $region29: #{tpu_custom_call.1} parent=1 // pred_fallthru
      _
    // Predicated region
    $region30: #{tpu_custom_call.1} parent=1 // pred_check
      _
    $region31: #{tpu_custom_call.1} parent=1 // pred_check_branch
      %65 = sbr.rel (0) target = $region33
    $region32: #{tpu_custom_call.1} parent=1 // pred_region
      _
    $region33: #{tpu_custom_call.1} parent=1 // pred_fallthru
      _
    // Predicated region
    $region34: #{tpu_custom_call.1} parent=1 // pred_check
      _
    $region35: #{tpu_custom_call.1} parent=1 // pred_check_branch
      %67 = sbr.rel (0) target = $region37
    $region36: #{tpu_custom_call.1} parent=1 // pred_region
      _
    $region37: #{tpu_custom_call.1} parent=1 // pred_fallthru
      _
    // Predicated region
    $region38: #{tpu_custom_call.1} parent=1 // pred_check
      _
    $region39: #{tpu_custom_call.1} parent=1 // pred_check_branch
      %69 = sbr.rel (0) target = $region41
    $region40: #{tpu_custom_call.1} parent=1 // pred_region
      %70 = dma.done [#allocation3], 256
    $region41: #{tpu_custom_call.1} parent=1 // pred_fallthru
      _
    // Predicated region
    $region42: #{tpu_custom_call.1} parent=1 // pred_check
      _
    $region43: #{tpu_custom_call.1} parent=1 // pred_check_branch
      %72 = sbr.rel (0) target = $region45
    $region44: #{tpu_custom_call.1} parent=1 // pred_region
      %73 = dma.done [#allocation6], 256
    $region45: #{tpu_custom_call.1} parent=1 // pred_fallthru
      _
    // Predicated region
    $region46: #{tpu_custom_call.1} parent=1 // pred_check
      _
    $region47: #{tpu_custom_call.1} parent=1 // pred_check_branch
      %75 = sbr.rel (0) target = $region49
    $region48: #{tpu_custom_call.1} parent=1 // pred_region
      %76 = dma.done [#allocation6], 256
    $region49: #{tpu_custom_call.1} parent=1 // pred_fallthru
      _
    %v77 = vld [vmem:[#allocation2] sm:$0xff]
    %v78 = vld [vmem:[#allocation2 + $0x8] sm:$0xff]
    %v79 = vld [vmem:[#allocation5] sm:$0xff]
    %v80 = vld [vmem:[#allocation5 + $0x8] sm:$0xff]
    %v81 = vld [vmem:[#allocation7] sm:$0xff]
    %v82 = vld [vmem:[#allocation7 + $0x8] sm:$0xff]
    %v83 = vld [vmem:[%s3] sm:$0xff]
    %v84 = vld [vmem:[%s3 + $0x8] sm:$0xff]
    %v85 = vld [vmem:[%s3 + $0x10] sm:$0xff]
    %v86 = vld [vmem:[%s3 + $0x18] sm:$0xff]
    %v87 = vld [vmem:[%s4] sm:$0xff]
    %v88 = vld [vmem:[%s4 + $0x8] sm:$0xff]
    %v89 = vld [vmem:[%s4 + $0x10] sm:$0xff]
    %v90 = vld [vmem:[%s4 + $0x18] sm:$0xff]
    %v91 = vld [vmem:[%s5] sm:$0xff]
    %v92 = vld [vmem:[%s5 + $0x8] sm:$0xff]
    %v93 = vld [vmem:[%s5 + $0x10] sm:$0xff]
    %v94 = vld [vmem:[%s5 + $0x18] sm:$0xff]
    %v95 = vld [vmem:[%s6] sm:$0xff]
    %v96 = vld [vmem:[%s6 + $0x8] sm:$0xff]
    %v97 = vld [vmem:[%s6 + $0x10] sm:$0xff]
    %v98 = vld [vmem:[%s6 + $0x18] sm:$0xff]
    %v99 = vld [vmem:[%s6 + $0x20] sm:$0xff]
    %v100 = vld [vmem:[%s6 + $0x28] sm:$0xff]
    %v101 = vld [vmem:[%s6 + $0x30] sm:$0xff]
    %v102 = vld [vmem:[%s6 + $0x38] sm:$0xff]
    %vm103 = vcmask 130048
    %v105 = vsel %vm103, %v77, 0
    %107 = vmatprep.subr.mxu0 0.0
    %108 = vmatpush1.msra.mxu0 0.0
    %109 = vmatprep.subr.mxu0 0.0
    %110 = vmatpush1.msra.mxu0 0.0
    %111 = vmatprep.subr.mxu0 0.0
    %112 = vmatpush1.msra.mxu0 0.0
    %113 = vmatprep.subr.mxu0 0.0
    %114 = vmatpush1.msra.mxu0 0.0
    %115 = vmatprep.subr.mxu0 0.0
    %116 = vmatpush1.msra.mxu0 0.0
    %117 = vmatprep.subr.mxu0 0.0
    %118 = vmatpush1.msra.mxu0 0.0
    %119 = vmatprep.subr.mxu0 0.0
    %120 = vmatpush1.msra.mxu0 0.0
    %121 = vmatprep.subr.mxu0 0.0
    %122 = vmatpush1.msra.mxu0 0.0
    %123 = vmatprep.subr.mxu0 0.0
    %124 = vmatpush1.msra.mxu0 0.0
    %125 = vmatprep.subr.mxu0 0.0
    %126 = vmatpush1.msra.mxu0 0.0
    %127 = vmatprep.subr.mxu0 0.0
    %128 = vmatpush1.msra.mxu0 0.0
    %129 = vmatprep.subr.mxu0 0.0
    %130 = vmatpush1.msra.mxu0 0.0
    %131 = vmatprep.subr.mxu0 0.0
    %132 = vmatpush1.msra.mxu0 0.0
    %133 = vmatprep.subr.mxu0 0.0
    %134 = vmatpush1.msra.mxu0 0.0
    %135 = vmatprep.subr.mxu0 0.0
    %136 = vmatpush1.msra.mxu0 %v84
    %137 = vmatprep.subr.mxu0 0.0
    %138 = vmatpush1.msra.mxu0 %v83
    %139 = vmatprep.subr.mxu0 0.0
    %140 = vmatpush2.msra.mxu0 0.0
    %141 = vmatprep.subr.mxu0 0.0
    %142 = vmatpush2.msra.mxu0 0.0
    %143 = vmatprep.subr.mxu0 0.0
    %144 = vmatpush2.msra.mxu0 0.0
    %145 = vmatprep.subr.mxu0 0.0
    %146 = vmatpush2.msra.mxu0 0.0
    %147 = vmatprep.subr.mxu0 0.0
    %148 = vmatpush2.msra.mxu0 0.0
    %149 = vmatprep.subr.mxu0 0.0
    %150 = vmatpush2.msra.mxu0 0.0
    %151 = vmatprep.subr.mxu0 0.0
    %152 = vmatpush2.msra.mxu0 0.0
    %153 = vmatprep.subr.mxu0 0.0
    %154 = vmatpush2.msra.mxu0 0.0
    %155 = vmatprep.subr.mxu0 0.0
    %156 = vmatpush2.msra.mxu0 0.0
    %157 = vmatprep.subr.mxu0 0.0
    %158 = vmatpush2.msra.mxu0 0.0
    %159 = vmatprep.subr.mxu0 0.0
    %160 = vmatpush2.msra.mxu0 0.0
    %161 = vmatprep.subr.mxu0 0.0
    %162 = vmatpush2.msra.mxu0 0.0
    %163 = vmatprep.subr.mxu0 0.0
    %164 = vmatpush2.msra.mxu0 0.0
    %165 = vmatprep.subr.mxu0 0.0
    %166 = vmatpush2.msra.mxu0 0.0
    %167 = vmatprep.subr.mxu0 0.0
    %168 = vmatpush2.msra.mxu0 0.0
    %169 = vmatprep.subr.mxu0 0.0
    %170 = vmatpush2.msra.mxu0 0.0
    %171 = vmatprep.mubr.f32.mxu0 0.0
    %172 = vmatmul.mubr.f32.gmra.mxu0 %v105
    %v173 = vpop.f32.mrf.mxu0
    %v174 = vadd.f32 0.0, %v173
    %v175 = vpop.f32.mrf.mxu0
    %176 = vdwg.mxu0
    %177 = vmatprep.subr.mxu0 0.0
    %178 = vmatpush1.msra.mxu0 0.0
    %179 = vmatprep.subr.mxu0 0.0
    %180 = vmatpush1.msra.mxu0 0.0
    %181 = vmatprep.subr.mxu0 0.0
    %182 = vmatpush1.msra.mxu0 0.0
    %183 = vmatprep.subr.mxu0 0.0
    %184 = vmatpush1.msra.mxu0 0.0
    %185 = vmatprep.subr.mxu0 0.0
    %186 = vmatpush1.msra.mxu0 0.0
    %187 = vmatprep.subr.mxu0 0.0
    %188 = vmatpush1.msra.mxu0 0.0
    %189 = vmatprep.subr.mxu0 0.0
    %190 = vmatpush1.msra.mxu0 0.0
    %191 = vmatprep.subr.mxu0 0.0
    %192 = vmatpush1.msra.mxu0 0.0
    %193 = vmatprep.subr.mxu0 0.0
    %194 = vmatpush1.msra.mxu0 0.0
    %195 = vmatprep.subr.mxu0 0.0
    %196 = vmatpush1.msra.mxu0 0.0
    %197 = vmatprep.subr.mxu0 0.0
    %198 = vmatpush1.msra.mxu0 0.0
    %199 = vmatprep.subr.mxu0 0.0
    %200 = vmatpush1.msra.mxu0 0.0
    %201 = vmatprep.subr.mxu0 0.0
    %202 = vmatpush1.msra.mxu0 0.0
    %203 = vmatprep.subr.mxu0 0.0
    %204 = vmatpush1.msra.mxu0 0.0
    %205 = vmatprep.subr.mxu0 0.0
    %206 = vmatpush1.msra.mxu0 %v86
    %207 = vmatprep.subr.mxu0 0.0
    %208 = vmatpush1.msra.mxu0 %v85
    %209 = vmatprep.subr.mxu0 0.0
    %210 = vmatpush2.msra.mxu0 0.0
    %211 = vmatprep.subr.mxu0 0.0
    %212 = vmatpush2.msra.mxu0 0.0
    %213 = vmatprep.subr.mxu0 0.0
    %214 = vmatpush2.msra.mxu0 0.0
    %215 = vmatprep.subr.mxu0 0.0
    %216 = vmatpush2.msra.mxu0 0.0
    %217 = vmatprep.subr.mxu0 0.0
    %218 = vmatpush2.msra.mxu0 0.0
    %219 = vmatprep.subr.mxu0 0.0
    %220 = vmatpush2.msra.mxu0 0.0
    %221 = vmatprep.subr.mxu0 0.0
    %222 = vmatpush2.msra.mxu0 0.0
    %223 = vmatprep.subr.mxu0 0.0
    %224 = vmatpush2.msra.mxu0 0.0
    %225 = vmatprep.subr.mxu0 0.0
    %226 = vmatpush2.msra.mxu0 0.0
    %227 = vmatprep.subr.mxu0 0.0
    %228 = vmatpush2.msra.mxu0 0.0
    %229 = vmatprep.subr.mxu0 0.0
    %230 = vmatpush2.msra.mxu0 0.0
    %231 = vmatprep.subr.mxu0 0.0
    %232 = vmatpush2.msra.mxu0 0.0
    %233 = vmatprep.subr.mxu0 0.0
    %234 = vmatpush2.msra.mxu0 0.0
    %235 = vmatprep.subr.mxu0 0.0
    %236 = vmatpush2.msra.mxu0 0.0
    %237 = vmatprep.subr.mxu0 0.0
    %238 = vmatpush2.msra.mxu0 0.0
    %239 = vmatprep.subr.mxu0 0.0
    %240 = vmatpush2.msra.mxu0 0.0
    %241 = vmatprep.mubr.f32.mxu0 0.0
    %242 = vmatmul.mubr.f32.gmra.mxu0 %v105
    %v243 = vpop.f32.mrf.mxu0
    %v244 = vadd.f32 0.0, %v243
    %v245 = vpop.f32.mrf.mxu0
    %246 = vdwg.mxu0
    %v248 = vsel %vm103, %v78, 0
    %250 = vmatprep.subr.mxu0 0.0
    %251 = vmatpush1.msra.mxu0 0.0
    %252 = vmatprep.subr.mxu0 0.0
    %253 = vmatpush1.msra.mxu0 0.0
    %254 = vmatprep.subr.mxu0 0.0
    %255 = vmatpush1.msra.mxu0 0.0
    %256 = vmatprep.subr.mxu0 0.0
    %257 = vmatpush1.msra.mxu0 0.0
    %258 = vmatprep.subr.mxu0 0.0
    %259 = vmatpush1.msra.mxu0 0.0
    %260 = vmatprep.subr.mxu0 0.0
    %261 = vmatpush1.msra.mxu0 0.0
    %262 = vmatprep.subr.mxu0 0.0
    %263 = vmatpush1.msra.mxu0 0.0
    %264 = vmatprep.subr.mxu0 0.0
    %265 = vmatpush1.msra.mxu0 0.0
    %266 = vmatprep.subr.mxu0 0.0
    %267 = vmatpush1.msra.mxu0 0.0
    %268 = vmatprep.subr.mxu0 0.0
    %269 = vmatpush1.msra.mxu0 0.0
    %270 = vmatprep.subr.mxu0 0.0
    %271 = vmatpush1.msra.mxu0 0.0
    %272 = vmatprep.subr.mxu0 0.0
    %273 = vmatpush1.msra.mxu0 0.0
    %274 = vmatprep.subr.mxu0 0.0
    %275 = vmatpush1.msra.mxu0 0.0
    %276 = vmatprep.subr.mxu0 0.0
    %277 = vmatpush1.msra.mxu0 0.0
    %278 = vmatprep.subr.mxu0 0.0
    %279 = vmatpush1.msra.mxu0 %v84
    %280 = vmatprep.subr.mxu0 0.0
    %281 = vmatpush1.msra.mxu0 %v83
    %282 = vmatprep.subr.mxu0 0.0
    %283 = vmatpush2.msra.mxu0 0.0
    %284 = vmatprep.subr.mxu0 0.0
    %285 = vmatpush2.msra.mxu0 0.0
    %286 = vmatprep.subr.mxu0 0.0
    %287 = vmatpush2.msra.mxu0 0.0
    %288 = vmatprep.subr.mxu0 0.0
    %289 = vmatpush2.msra.mxu0 0.0
    %290 = vmatprep.subr.mxu0 0.0
    %291 = vmatpush2.msra.mxu0 0.0
    %292 = vmatprep.subr.mxu0 0.0
    %293 = vmatpush2.msra.mxu0 0.0
    %294 = vmatprep.subr.mxu0 0.0
    %295 = vmatpush2.msra.mxu0 0.0
    %296 = vmatprep.subr.mxu0 0.0
    %297 = vmatpush2.msra.mxu0 0.0
    %298 = vmatprep.subr.mxu0 0.0
    %299 = vmatpush2.msra.mxu0 0.0
    %300 = vmatprep.subr.mxu0 0.0
    %301 = vmatpush2.msra.mxu0 0.0
    %302 = vmatprep.subr.mxu0 0.0
    %303 = vmatpush2.msra.mxu0 0.0
    %304 = vmatprep.subr.mxu0 0.0
    %305 = vmatpush2.msra.mxu0 0.0
    %306 = vmatprep.subr.mxu0 0.0
    %307 = vmatpush2.msra.mxu0 0.0
    %308 = vmatprep.subr.mxu0 0.0
    %309 = vmatpush2.msra.mxu0 0.0
    %310 = vmatprep.subr.mxu0 0.0
    %311 = vmatpush2.msra.mxu0 0.0
    %312 = vmatprep.subr.mxu0 0.0
    %313 = vmatpush2.msra.mxu0 0.0
    %314 = vmatprep.mubr.f32.mxu0 0.0
    %315 = vmatmul.mubr.f32.gmra.mxu0 %v248
    %v316 = vpop.f32.mrf.mxu0
    %v317 = vadd.f32 0.0, %v316
    %v318 = vpop.f32.mrf.mxu0
    %319 = vdwg.mxu0
    %320 = vmatprep.subr.mxu0 0.0
    %321 = vmatpush1.msra.mxu0 0.0
    %322 = vmatprep.subr.mxu0 0.0
    %323 = vmatpush1.msra.mxu0 0.0
    %324 = vmatprep.subr.mxu0 0.0
    %325 = vmatpush1.msra.mxu0 0.0
    %326 = vmatprep.subr.mxu0 0.0
    %327 = vmatpush1.msra.mxu0 0.0
    %328 = vmatprep.subr.mxu0 0.0
    %329 = vmatpush1.msra.mxu0 0.0
    %330 = vmatprep.subr.mxu0 0.0
    %331 = vmatpush1.msra.mxu0 0.0
    %332 = vmatprep.subr.mxu0 0.0
    %333 = vmatpush1.msra.mxu0 0.0
    %334 = vmatprep.subr.mxu0 0.0
    %335 = vmatpush1.msra.mxu0 0.0
    %336 = vmatprep.subr.mxu0 0.0
    %337 = vmatpush1.msra.mxu0 0.0
    %338 = vmatprep.subr.mxu0 0.0
    %339 = vmatpush1.msra.mxu0 0.0
    %340 = vmatprep.subr.mxu0 0.0
    %341 = vmatpush1.msra.mxu0 0.0
    %342 = vmatprep.subr.mxu0 0.0
    %343 = vmatpush1.msra.mxu0 0.0
    %344 = vmatprep.subr.mxu0 0.0
    %345 = vmatpush1.msra.mxu0 0.0
    %346 = vmatprep.subr.mxu0 0.0
    %347 = vmatpush1.msra.mxu0 0.0
    %348 = vmatprep.subr.mxu0 0.0
    %349 = vmatpush1.msra.mxu0 %v86
    %350 = vmatprep.subr.mxu0 0.0
    %351 = vmatpush1.msra.mxu0 %v85
    %352 = vmatprep.subr.mxu0 0.0
    %353 = vmatpush2.msra.mxu0 0.0
    %354 = vmatprep.subr.mxu0 0.0
    %355 = vmatpush2.msra.mxu0 0.0
    %356 = vmatprep.subr.mxu0 0.0
    %357 = vmatpush2.msra.mxu0 0.0
    %358 = vmatprep.subr.mxu0 0.0
    %359 = vmatpush2.msra.mxu0 0.0
    %360 = vmatprep.subr.mxu0 0.0
    %361 = vmatpush2.msra.mxu0 0.0
    %362 = vmatprep.subr.mxu0 0.0
    %363 = vmatpush2.msra.mxu0 0.0
    %364 = vmatprep.subr.mxu0 0.0
    %365 = vmatpush2.msra.mxu0 0.0
    %366 = vmatprep.subr.mxu0 0.0
    %367 = vmatpush2.msra.mxu0 0.0
    %368 = vmatprep.subr.mxu0 0.0
    %369 = vmatpush2.msra.mxu0 0.0
    %370 = vmatprep.subr.mxu0 0.0
    %371 = vmatpush2.msra.mxu0 0.0
    %372 = vmatprep.subr.mxu0 0.0
    %373 = vmatpush2.msra.mxu0 0.0
    %374 = vmatprep.subr.mxu0 0.0
    %375 = vmatpush2.msra.mxu0 0.0
    %376 = vmatprep.subr.mxu0 0.0
    %377 = vmatpush2.msra.mxu0 0.0
    %378 = vmatprep.subr.mxu0 0.0
    %379 = vmatpush2.msra.mxu0 0.0
    %380 = vmatprep.subr.mxu0 0.0
    %381 = vmatpush2.msra.mxu0 0.0
    %382 = vmatprep.subr.mxu0 0.0
    %383 = vmatpush2.msra.mxu0 0.0
    %384 = vmatprep.mubr.f32.mxu0 0.0
    %385 = vmatmul.mubr.f32.gmra.mxu0 %v248
    %v386 = vpop.f32.mrf.mxu0
    %v387 = vadd.f32 0.0, %v386
    %v388 = vpop.f32.mrf.mxu0
    %389 = vdwg.mxu0
    %v391 = vsel %vm103, %v79, 0
    %393 = vmatprep.subr.mxu0 0.0
    %394 = vmatpush1.msra.mxu0 0.0
    %395 = vmatprep.subr.mxu0 0.0
    %396 = vmatpush1.msra.mxu0 0.0
    %397 = vmatprep.subr.mxu0 0.0
    %398 = vmatpush1.msra.mxu0 0.0
    %399 = vmatprep.subr.mxu0 0.0
    %400 = vmatpush1.msra.mxu0 0.0
    %401 = vmatprep.subr.mxu0 0.0
    %402 = vmatpush1.msra.mxu0 0.0
    %403 = vmatprep.subr.mxu0 0.0
    %404 = vmatpush1.msra.mxu0 0.0
    %405 = vmatprep.subr.mxu0 0.0
    %406 = vmatpush1.msra.mxu0 0.0
    %407 = vmatprep.subr.mxu0 0.0
    %408 = vmatpush1.msra.mxu0 0.0
    %409 = vmatprep.subr.mxu0 0.0
    %410 = vmatpush1.msra.mxu0 0.0
    %411 = vmatprep.subr.mxu0 0.0
    %412 = vmatpush1.msra.mxu0 0.0
    %413 = vmatprep.subr.mxu0 0.0
    %414 = vmatpush1.msra.mxu0 0.0
    %415 = vmatprep.subr.mxu0 0.0
    %416 = vmatpush1.msra.mxu0 0.0
    %417 = vmatprep.subr.mxu0 0.0
    %418 = vmatpush1.msra.mxu0 0.0
    %419 = vmatprep.subr.mxu0 0.0
    %420 = vmatpush1.msra.mxu0 0.0
    %421 = vmatprep.subr.mxu0 0.0
    %422 = vmatpush1.msra.mxu0 %v88
    %423 = vmatprep.subr.mxu0 0.0
    %424 = vmatpush1.msra.mxu0 %v87
    %425 = vmatprep.subr.mxu0 0.0
    %426 = vmatpush2.msra.mxu0 0.0
    %427 = vmatprep.subr.mxu0 0.0
    %428 = vmatpush2.msra.mxu0 0.0
    %429 = vmatprep.subr.mxu0 0.0
    %430 = vmatpush2.msra.mxu0 0.0
    %431 = vmatprep.subr.mxu0 0.0
    %432 = vmatpush2.msra.mxu0 0.0
    %433 = vmatprep.subr.mxu0 0.0
    %434 = vmatpush2.msra.mxu0 0.0
    %435 = vmatprep.subr.mxu0 0.0
    %436 = vmatpush2.msra.mxu0 0.0
    %437 = vmatprep.subr.mxu0 0.0
    %438 = vmatpush2.msra.mxu0 0.0
    %439 = vmatprep.subr.mxu0 0.0
    %440 = vmatpush2.msra.mxu0 0.0
    %441 = vmatprep.subr.mxu0 0.0
    %442 = vmatpush2.msra.mxu0 0.0
    %443 = vmatprep.subr.mxu0 0.0
    %444 = vmatpush2.msra.mxu0 0.0
    %445 = vmatprep.subr.mxu0 0.0
    %446 = vmatpush2.msra.mxu0 0.0
    %447 = vmatprep.subr.mxu0 0.0
    %448 = vmatpush2.msra.mxu0 0.0
    %449 = vmatprep.subr.mxu0 0.0
    %450 = vmatpush2.msra.mxu0 0.0
    %451 = vmatprep.subr.mxu0 0.0
    %452 = vmatpush2.msra.mxu0 0.0
    %453 = vmatprep.subr.mxu0 0.0
    %454 = vmatpush2.msra.mxu0 0.0
    %455 = vmatprep.subr.mxu0 0.0
    %456 = vmatpush2.msra.mxu0 0.0
    %457 = vmatprep.mubr.f32.mxu0 0.0
    %458 = vmatmul.mubr.f32.gmra.mxu0 %v391
    %v459 = vpop.f32.mrf.mxu0
    %v460 = vadd.f32 0.0, %v459
    %v461 = vpop.f32.mrf.mxu0
    %462 = vdwg.mxu0
    %463 = vmatprep.subr.mxu0 0.0
    %464 = vmatpush1.msra.mxu0 0.0
    %465 = vmatprep.subr.mxu0 0.0
    %466 = vmatpush1.msra.mxu0 0.0
    %467 = vmatprep.subr.mxu0 0.0
    %468 = vmatpush1.msra.mxu0 0.0
    %469 = vmatprep.subr.mxu0 0.0
    %470 = vmatpush1.msra.mxu0 0.0
    %471 = vmatprep.subr.mxu0 0.0
    %472 = vmatpush1.msra.mxu0 0.0
    %473 = vmatprep.subr.mxu0 0.0
    %474 = vmatpush1.msra.mxu0 0.0
    %475 = vmatprep.subr.mxu0 0.0
    %476 = vmatpush1.msra.mxu0 0.0
    %477 = vmatprep.subr.mxu0 0.0
    %478 = vmatpush1.msra.mxu0 0.0
    %479 = vmatprep.subr.mxu0 0.0
    %480 = vmatpush1.msra.mxu0 0.0
    %481 = vmatprep.subr.mxu0 0.0
    %482 = vmatpush1.msra.mxu0 0.0
    %483 = vmatprep.subr.mxu0 0.0
    %484 = vmatpush1.msra.mxu0 0.0
    %485 = vmatprep.subr.mxu0 0.0
    %486 = vmatpush1.msra.mxu0 0.0
    %487 = vmatprep.subr.mxu0 0.0
    %488 = vmatpush1.msra.mxu0 0.0
    %489 = vmatprep.subr.mxu0 0.0
    %490 = vmatpush1.msra.mxu0 0.0
    %491 = vmatprep.subr.mxu0 0.0
    %492 = vmatpush1.msra.mxu0 %v90
    %493 = vmatprep.subr.mxu0 0.0
    %494 = vmatpush1.msra.mxu0 %v89
    %495 = vmatprep.subr.mxu0 0.0
    %496 = vmatpush2.msra.mxu0 0.0
    %497 = vmatprep.subr.mxu0 0.0
    %498 = vmatpush2.msra.mxu0 0.0
    %499 = vmatprep.subr.mxu0 0.0
    %500 = vmatpush2.msra.mxu0 0.0
    %501 = vmatprep.subr.mxu0 0.0
    %502 = vmatpush2.msra.mxu0 0.0
    %503 = vmatprep.subr.mxu0 0.0
    %504 = vmatpush2.msra.mxu0 0.0
    %505 = vmatprep.subr.mxu0 0.0
    %506 = vmatpush2.msra.mxu0 0.0
    %507 = vmatprep.subr.mxu0 0.0
    %508 = vmatpush2.msra.mxu0 0.0
    %509 = vmatprep.subr.mxu0 0.0
    %510 = vmatpush2.msra.mxu0 0.0
    %511 = vmatprep.subr.mxu0 0.0
    %512 = vmatpush2.msra.mxu0 0.0
    %513 = vmatprep.subr.mxu0 0.0
    %514 = vmatpush2.msra.mxu0 0.0
    %515 = vmatprep.subr.mxu0 0.0
    %516 = vmatpush2.msra.mxu0 0.0
    %517 = vmatprep.subr.mxu0 0.0
    %518 = vmatpush2.msra.mxu0 0.0
    %519 = vmatprep.subr.mxu0 0.0
    %520 = vmatpush2.msra.mxu0 0.0
    %521 = vmatprep.subr.mxu0 0.0
    %522 = vmatpush2.msra.mxu0 0.0
    %523 = vmatprep.subr.mxu0 0.0
    %524 = vmatpush2.msra.mxu0 0.0
    %525 = vmatprep.subr.mxu0 0.0
    %526 = vmatpush2.msra.mxu0 0.0
    %527 = vmatprep.mubr.f32.mxu0 0.0
    %528 = vmatmul.mubr.f32.gmra.mxu0 %v391
    %v529 = vpop.f32.mrf.mxu0
    %v530 = vadd.f32 0.0, %v529
    %v531 = vpop.f32.mrf.mxu0
    %532 = vdwg.mxu0
    %v534 = vsel %vm103, %v80, 0
    %536 = vmatprep.subr.mxu0 0.0
    %537 = vmatpush1.msra.mxu0 0.0
    %538 = vmatprep.subr.mxu0 0.0
    %539 = vmatpush1.msra.mxu0 0.0
    %540 = vmatprep.subr.mxu0 0.0
    %541 = vmatpush1.msra.mxu0 0.0
    %542 = vmatprep.subr.mxu0 0.0
    %543 = vmatpush1.msra.mxu0 0.0
    %544 = vmatprep.subr.mxu0 0.0
    %545 = vmatpush1.msra.mxu0 0.0
    %546 = vmatprep.subr.mxu0 0.0
    %547 = vmatpush1.msra.mxu0 0.0
    %548 = vmatprep.subr.mxu0 0.0
    %549 = vmatpush1.msra.mxu0 0.0
    %550 = vmatprep.subr.mxu0 0.0
    %551 = vmatpush1.msra.mxu0 0.0
    %552 = vmatprep.subr.mxu0 0.0
    %553 = vmatpush1.msra.mxu0 0.0
    %554 = vmatprep.subr.mxu0 0.0
    %555 = vmatpush1.msra.mxu0 0.0
    %556 = vmatprep.subr.mxu0 0.0
    %557 = vmatpush1.msra.mxu0 0.0
    %558 = vmatprep.subr.mxu0 0.0
    %559 = vmatpush1.msra.mxu0 0.0
    %560 = vmatprep.subr.mxu0 0.0
    %561 = vmatpush1.msra.mxu0 0.0
    %562 = vmatprep.subr.mxu0 0.0
    %563 = vmatpush1.msra.mxu0 0.0
    %564 = vmatprep.subr.mxu0 0.0
    %565 = vmatpush1.msra.mxu0 %v88
    %566 = vmatprep.subr.mxu0 0.0
    %567 = vmatpush1.msra.mxu0 %v87
    %568 = vmatprep.subr.mxu0 0.0
    %569 = vmatpush2.msra.mxu0 0.0
    %570 = vmatprep.subr.mxu0 0.0
    %571 = vmatpush2.msra.mxu0 0.0
    %572 = vmatprep.subr.mxu0 0.0
    %573 = vmatpush2.msra.mxu0 0.0
    %574 = vmatprep.subr.mxu0 0.0
    %575 = vmatpush2.msra.mxu0 0.0
    %576 = vmatprep.subr.mxu0 0.0
    %577 = vmatpush2.msra.mxu0 0.0
    %578 = vmatprep.subr.mxu0 0.0
    %579 = vmatpush2.msra.mxu0 0.0
    %580 = vmatprep.subr.mxu0 0.0
    %581 = vmatpush2.msra.mxu0 0.0
    %582 = vmatprep.subr.mxu0 0.0
    %583 = vmatpush2.msra.mxu0 0.0
    %584 = vmatprep.subr.mxu0 0.0
    %585 = vmatpush2.msra.mxu0 0.0
    %586 = vmatprep.subr.mxu0 0.0
    %587 = vmatpush2.msra.mxu0 0.0
    %588 = vmatprep.subr.mxu0 0.0
    %589 = vmatpush2.msra.mxu0 0.0
    %590 = vmatprep.subr.mxu0 0.0
    %591 = vmatpush2.msra.mxu0 0.0
    %592 = vmatprep.subr.mxu0 0.0
    %593 = vmatpush2.msra.mxu0 0.0
    %594 = vmatprep.subr.mxu0 0.0
    %595 = vmatpush2.msra.mxu0 0.0
    %596 = vmatprep.subr.mxu0 0.0
    %597 = vmatpush2.msra.mxu0 0.0
    %598 = vmatprep.subr.mxu0 0.0
    %599 = vmatpush2.msra.mxu0 0.0
    %600 = vmatprep.mubr.f32.mxu0 0.0
    %601 = vmatmul.mubr.f32.gmra.mxu0 %v534
    %v602 = vpop.f32.mrf.mxu0
    %v603 = vadd.f32 0.0, %v602
    %v604 = vpop.f32.mrf.mxu0
    %605 = vdwg.mxu0
    %606 = vmatprep.subr.mxu0 0.0
    %607 = vmatpush1.msra.mxu0 0.0
    %608 = vmatprep.subr.mxu0 0.0
    %609 = vmatpush1.msra.mxu0 0.0
    %610 = vmatprep.subr.mxu0 0.0
    %611 = vmatpush1.msra.mxu0 0.0
    %612 = vmatprep.subr.mxu0 0.0
    %613 = vmatpush1.msra.mxu0 0.0
    %614 = vmatprep.subr.mxu0 0.0
    %615 = vmatpush1.msra.mxu0 0.0
    %616 = vmatprep.subr.mxu0 0.0
    %617 = vmatpush1.msra.mxu0 0.0
    %618 = vmatprep.subr.mxu0 0.0
    %619 = vmatpush1.msra.mxu0 0.0
    %620 = vmatprep.subr.mxu0 0.0
    %621 = vmatpush1.msra.mxu0 0.0
    %622 = vmatprep.subr.mxu0 0.0
    %623 = vmatpush1.msra.mxu0 0.0
    %624 = vmatprep.subr.mxu0 0.0
    %625 = vmatpush1.msra.mxu0 0.0
    %626 = vmatprep.subr.mxu0 0.0
    %627 = vmatpush1.msra.mxu0 0.0
    %628 = vmatprep.subr.mxu0 0.0
    %629 = vmatpush1.msra.mxu0 0.0
    %630 = vmatprep.subr.mxu0 0.0
    %631 = vmatpush1.msra.mxu0 0.0
    %632 = vmatprep.subr.mxu0 0.0
    %633 = vmatpush1.msra.mxu0 0.0
    %634 = vmatprep.subr.mxu0 0.0
    %635 = vmatpush1.msra.mxu0 %v90
    %636 = vmatprep.subr.mxu0 0.0
    %637 = vmatpush1.msra.mxu0 %v89
    %638 = vmatprep.subr.mxu0 0.0
    %639 = vmatpush2.msra.mxu0 0.0
    %640 = vmatprep.subr.mxu0 0.0
    %641 = vmatpush2.msra.mxu0 0.0
    %642 = vmatprep.subr.mxu0 0.0
    %643 = vmatpush2.msra.mxu0 0.0
    %644 = vmatprep.subr.mxu0 0.0
    %645 = vmatpush2.msra.mxu0 0.0
    %646 = vmatprep.subr.mxu0 0.0
    %647 = vmatpush2.msra.mxu0 0.0
    %648 = vmatprep.subr.mxu0 0.0
    %649 = vmatpush2.msra.mxu0 0.0
    %650 = vmatprep.subr.mxu0 0.0
    %651 = vmatpush2.msra.mxu0 0.0
    %652 = vmatprep.subr.mxu0 0.0
    %653 = vmatpush2.msra.mxu0 0.0
    %654 = vmatprep.subr.mxu0 0.0
    %655 = vmatpush2.msra.mxu0 0.0
    %656 = vmatprep.subr.mxu0 0.0
    %657 = vmatpush2.msra.mxu0 0.0
    %658 = vmatprep.subr.mxu0 0.0
    %659 = vmatpush2.msra.mxu0 0.0
    %660 = vmatprep.subr.mxu0 0.0
    %661 = vmatpush2.msra.mxu0 0.0
    %662 = vmatprep.subr.mxu0 0.0
    %663 = vmatpush2.msra.mxu0 0.0
    %664 = vmatprep.subr.mxu0 0.0
    %665 = vmatpush2.msra.mxu0 0.0
    %666 = vmatprep.subr.mxu0 0.0
    %667 = vmatpush2.msra.mxu0 0.0
    %668 = vmatprep.subr.mxu0 0.0
    %669 = vmatpush2.msra.mxu0 0.0
    %670 = vmatprep.mubr.f32.mxu0 0.0
    %671 = vmatmul.mubr.f32.gmra.mxu0 %v534
    %v672 = vpop.f32.mrf.mxu0
    %v673 = vadd.f32 0.0, %v672
    %v674 = vpop.f32.mrf.mxu0
    %675 = vdwg.mxu0
    %v677 = vsel %vm103, %v81, 0
    %679 = vmatprep.subr.mxu0 0.0
    %680 = vmatpush1.msra.mxu0 0.0
    %681 = vmatprep.subr.mxu0 0.0
    %682 = vmatpush1.msra.mxu0 0.0
    %683 = vmatprep.subr.mxu0 0.0
    %684 = vmatpush1.msra.mxu0 0.0
    %685 = vmatprep.subr.mxu0 0.0
    %686 = vmatpush1.msra.mxu0 0.0
    %687 = vmatprep.subr.mxu0 0.0
    %688 = vmatpush1.msra.mxu0 0.0
    %689 = vmatprep.subr.mxu0 0.0
    %690 = vmatpush1.msra.mxu0 0.0
    %691 = vmatprep.subr.mxu0 0.0
    %692 = vmatpush1.msra.mxu0 0.0
    %693 = vmatprep.subr.mxu0 0.0
    %694 = vmatpush1.msra.mxu0 0.0
    %695 = vmatprep.subr.mxu0 0.0
    %696 = vmatpush1.msra.mxu0 0.0
    %697 = vmatprep.subr.mxu0 0.0
    %698 = vmatpush1.msra.mxu0 0.0
    %699 = vmatprep.subr.mxu0 0.0
    %700 = vmatpush1.msra.mxu0 0.0
    %701 = vmatprep.subr.mxu0 0.0
    %702 = vmatpush1.msra.mxu0 0.0
    %703 = vmatprep.subr.mxu0 0.0
    %704 = vmatpush1.msra.mxu0 0.0
    %705 = vmatprep.subr.mxu0 0.0
    %706 = vmatpush1.msra.mxu0 0.0
    %707 = vmatprep.subr.mxu0 0.0
    %708 = vmatpush1.msra.mxu0 %v92
    %709 = vmatprep.subr.mxu0 0.0
    %710 = vmatpush1.msra.mxu0 %v91
    %711 = vmatprep.subr.mxu0 0.0
    %712 = vmatpush2.msra.mxu0 0.0
    %713 = vmatprep.subr.mxu0 0.0
    %714 = vmatpush2.msra.mxu0 0.0
    %715 = vmatprep.subr.mxu0 0.0
    %716 = vmatpush2.msra.mxu0 0.0
    %717 = vmatprep.subr.mxu0 0.0
    %718 = vmatpush2.msra.mxu0 0.0
    %719 = vmatprep.subr.mxu0 0.0
    %720 = vmatpush2.msra.mxu0 0.0
    %721 = vmatprep.subr.mxu0 0.0
    %722 = vmatpush2.msra.mxu0 0.0
    %723 = vmatprep.subr.mxu0 0.0
    %724 = vmatpush2.msra.mxu0 0.0
    %725 = vmatprep.subr.mxu0 0.0
    %726 = vmatpush2.msra.mxu0 0.0
    %727 = vmatprep.subr.mxu0 0.0
    %728 = vmatpush2.msra.mxu0 0.0
    %729 = vmatprep.subr.mxu0 0.0
    %730 = vmatpush2.msra.mxu0 0.0
    %731 = vmatprep.subr.mxu0 0.0
    %732 = vmatpush2.msra.mxu0 0.0
    %733 = vmatprep.subr.mxu0 0.0
    %734 = vmatpush2.msra.mxu0 0.0
    %735 = vmatprep.subr.mxu0 0.0
    %736 = vmatpush2.msra.mxu0 0.0
    %737 = vmatprep.subr.mxu0 0.0
    %738 = vmatpush2.msra.mxu0 0.0
    %739 = vmatprep.subr.mxu0 0.0
    %740 = vmatpush2.msra.mxu0 0.0
    %741 = vmatprep.subr.mxu0 0.0
    %742 = vmatpush2.msra.mxu0 0.0
    %743 = vmatprep.mubr.f32.mxu0 0.0
    %744 = vmatmul.mubr.f32.gmra.mxu0 %v677
    %v745 = vpop.f32.mrf.mxu0
    %v746 = vadd.f32 0.0, %v745
    %v747 = vpop.f32.mrf.mxu0
    %748 = vdwg.mxu0
    %749 = vmatprep.subr.mxu0 0.0
    %750 = vmatpush1.msra.mxu0 0.0
    %751 = vmatprep.subr.mxu0 0.0
    %752 = vmatpush1.msra.mxu0 0.0
    %753 = vmatprep.subr.mxu0 0.0
    %754 = vmatpush1.msra.mxu0 0.0
    %755 = vmatprep.subr.mxu0 0.0
    %756 = vmatpush1.msra.mxu0 0.0
    %757 = vmatprep.subr.mxu0 0.0
    %758 = vmatpush1.msra.mxu0 0.0
    %759 = vmatprep.subr.mxu0 0.0
    %760 = vmatpush1.msra.mxu0 0.0
    %761 = vmatprep.subr.mxu0 0.0
    %762 = vmatpush1.msra.mxu0 0.0
    %763 = vmatprep.subr.mxu0 0.0
    %764 = vmatpush1.msra.mxu0 0.0
    %765 = vmatprep.subr.mxu0 0.0
    %766 = vmatpush1.msra.mxu0 0.0
    %767 = vmatprep.subr.mxu0 0.0
    %768 = vmatpush1.msra.mxu0 0.0
    %769 = vmatprep.subr.mxu0 0.0
    %770 = vmatpush1.msra.mxu0 0.0
    %771 = vmatprep.subr.mxu0 0.0
    %772 = vmatpush1.msra.mxu0 0.0
    %773 = vmatprep.subr.mxu0 0.0
    %774 = vmatpush1.msra.mxu0 0.0
    %775 = vmatprep.subr.mxu0 0.0
    %776 = vmatpush1.msra.mxu0 0.0
    %777 = vmatprep.subr.mxu0 0.0
    %778 = vmatpush1.msra.mxu0 %v94
    %779 = vmatprep.subr.mxu0 0.0
    %780 = vmatpush1.msra.mxu0 %v93
    %781 = vmatprep.subr.mxu0 0.0
    %782 = vmatpush2.msra.mxu0 0.0
    %783 = vmatprep.subr.mxu0 0.0
    %784 = vmatpush2.msra.mxu0 0.0
    %785 = vmatprep.subr.mxu0 0.0
    %786 = vmatpush2.msra.mxu0 0.0
    %787 = vmatprep.subr.mxu0 0.0
    %788 = vmatpush2.msra.mxu0 0.0
    %789 = vmatprep.subr.mxu0 0.0
    %790 = vmatpush2.msra.mxu0 0.0
    %791 = vmatprep.subr.mxu0 0.0
    %792 = vmatpush2.msra.mxu0 0.0
    %793 = vmatprep.subr.mxu0 0.0
    %794 = vmatpush2.msra.mxu0 0.0
    %795 = vmatprep.subr.mxu0 0.0
    %796 = vmatpush2.msra.mxu0 0.0
    %797 = vmatprep.subr.mxu0 0.0
    %798 = vmatpush2.msra.mxu0 0.0
    %799 = vmatprep.subr.mxu0 0.0
    %800 = vmatpush2.msra.mxu0 0.0
    %801 = vmatprep.subr.mxu0 0.0
    %802 = vmatpush2.msra.mxu0 0.0
    %803 = vmatprep.subr.mxu0 0.0
    %804 = vmatpush2.msra.mxu0 0.0
    %805 = vmatprep.subr.mxu0 0.0
    %806 = vmatpush2.msra.mxu0 0.0
    %807 = vmatprep.subr.mxu0 0.0
    %808 = vmatpush2.msra.mxu0 0.0
    %809 = vmatprep.subr.mxu0 0.0
    %810 = vmatpush2.msra.mxu0 0.0
    %811 = vmatprep.subr.mxu0 0.0
    %812 = vmatpush2.msra.mxu0 0.0
    %813 = vmatprep.mubr.f32.mxu0 0.0
    %814 = vmatmul.mubr.f32.gmra.mxu0 %v677
    %v815 = vpop.f32.mrf.mxu0
    %v816 = vadd.f32 0.0, %v815
    %v817 = vpop.f32.mrf.mxu0
    %818 = vdwg.mxu0
    %v820 = vsel %vm103, %v82, 0
    %822 = vmatprep.subr.mxu0 0.0
    %823 = vmatpush1.msra.mxu0 0.0
    %824 = vmatprep.subr.mxu0 0.0
    %825 = vmatpush1.msra.mxu0 0.0
    %826 = vmatprep.subr.mxu0 0.0
    %827 = vmatpush1.msra.mxu0 0.0
    %828 = vmatprep.subr.mxu0 0.0
    %829 = vmatpush1.msra.mxu0 0.0
    %830 = vmatprep.subr.mxu0 0.0
    %831 = vmatpush1.msra.mxu0 0.0
    %832 = vmatprep.subr.mxu0 0.0
    %833 = vmatpush1.msra.mxu0 0.0
    %834 = vmatprep.subr.mxu0 0.0
    %835 = vmatpush1.msra.mxu0 0.0
    %836 = vmatprep.subr.mxu0 0.0
    %837 = vmatpush1.msra.mxu0 0.0
    %838 = vmatprep.subr.mxu0 0.0
    %839 = vmatpush1.msra.mxu0 0.0
    %840 = vmatprep.subr.mxu0 0.0
    %841 = vmatpush1.msra.mxu0 0.0
    %842 = vmatprep.subr.mxu0 0.0
    %843 = vmatpush1.msra.mxu0 0.0
    %844 = vmatprep.subr.mxu0 0.0
    %845 = vmatpush1.msra.mxu0 0.0
    %846 = vmatprep.subr.mxu0 0.0
    %847 = vmatpush1.msra.mxu0 0.0
    %848 = vmatprep.subr.mxu0 0.0
    %849 = vmatpush1.msra.mxu0 0.0
    %850 = vmatprep.subr.mxu0 0.0
    %851 = vmatpush1.msra.mxu0 %v92
    %852 = vmatprep.subr.mxu0 0.0
    %853 = vmatpush1.msra.mxu0 %v91
    %854 = vmatprep.subr.mxu0 0.0
    %855 = vmatpush2.msra.mxu0 0.0
    %856 = vmatprep.subr.mxu0 0.0
    %857 = vmatpush2.msra.mxu0 0.0
    %858 = vmatprep.subr.mxu0 0.0
    %859 = vmatpush2.msra.mxu0 0.0
    %860 = vmatprep.subr.mxu0 0.0
    %861 = vmatpush2.msra.mxu0 0.0
    %862 = vmatprep.subr.mxu0 0.0
    %863 = vmatpush2.msra.mxu0 0.0
    %864 = vmatprep.subr.mxu0 0.0
    %865 = vmatpush2.msra.mxu0 0.0
    %866 = vmatprep.subr.mxu0 0.0
    %867 = vmatpush2.msra.mxu0 0.0
    %868 = vmatprep.subr.mxu0 0.0
    %869 = vmatpush2.msra.mxu0 0.0
    %870 = vmatprep.subr.mxu0 0.0
    %871 = vmatpush2.msra.mxu0 0.0
    %872 = vmatprep.subr.mxu0 0.0
    %873 = vmatpush2.msra.mxu0 0.0
    %874 = vmatprep.subr.mxu0 0.0
    %875 = vmatpush2.msra.mxu0 0.0
    %876 = vmatprep.subr.mxu0 0.0
    %877 = vmatpush2.msra.mxu0 0.0
    %878 = vmatprep.subr.mxu0 0.0
    %879 = vmatpush2.msra.mxu0 0.0
    %880 = vmatprep.subr.mxu0 0.0
    %881 = vmatpush2.msra.mxu0 0.0
    %882 = vmatprep.subr.mxu0 0.0
    %883 = vmatpush2.msra.mxu0 0.0
    %884 = vmatprep.subr.mxu0 0.0
    %885 = vmatpush2.msra.mxu0 0.0
    %886 = vmatprep.mubr.f32.mxu0 0.0
    %887 = vmatmul.mubr.f32.gmra.mxu0 %v820
    %v888 = vpop.f32.mrf.mxu0
    %v889 = vadd.f32 0.0, %v888
    %v890 = vpop.f32.mrf.mxu0
    %891 = vdwg.mxu0
    %892 = vmatprep.subr.mxu0 0.0
    %893 = vmatpush1.msra.mxu0 0.0
    %894 = vmatprep.subr.mxu0 0.0
    %895 = vmatpush1.msra.mxu0 0.0
    %896 = vmatprep.subr.mxu0 0.0
    %897 = vmatpush1.msra.mxu0 0.0
    %898 = vmatprep.subr.mxu0 0.0
    %899 = vmatpush1.msra.mxu0 0.0
    %900 = vmatprep.subr.mxu0 0.0
    %901 = vmatpush1.msra.mxu0 0.0
    %902 = vmatprep.subr.mxu0 0.0
    %903 = vmatpush1.msra.mxu0 0.0
    %904 = vmatprep.subr.mxu0 0.0
    %905 = vmatpush1.msra.mxu0 0.0
    %906 = vmatprep.subr.mxu0 0.0
    %907 = vmatpush1.msra.mxu0 0.0
    %908 = vmatprep.subr.mxu0 0.0
    %909 = vmatpush1.msra.mxu0 0.0
    %910 = vmatprep.subr.mxu0 0.0
    %911 = vmatpush1.msra.mxu0 0.0
    %912 = vmatprep.subr.mxu0 0.0
    %913 = vmatpush1.msra.mxu0 0.0
    %914 = vmatprep.subr.mxu0 0.0
    %915 = vmatpush1.msra.mxu0 0.0
    %916 = vmatprep.subr.mxu0 0.0
    %917 = vmatpush1.msra.mxu0 0.0
    %918 = vmatprep.subr.mxu0 0.0
    %919 = vmatpush1.msra.mxu0 0.0
    %920 = vmatprep.subr.mxu0 0.0
    %921 = vmatpush1.msra.mxu0 %v94
    %922 = vmatprep.subr.mxu0 0.0
    %923 = vmatpush1.msra.mxu0 %v93
    %924 = vmatprep.subr.mxu0 0.0
    %925 = vmatpush2.msra.mxu0 0.0
    %926 = vmatprep.subr.mxu0 0.0
    %927 = vmatpush2.msra.mxu0 0.0
    %928 = vmatprep.subr.mxu0 0.0
    %929 = vmatpush2.msra.mxu0 0.0
    %930 = vmatprep.subr.mxu0 0.0
    %931 = vmatpush2.msra.mxu0 0.0
    %932 = vmatprep.subr.mxu0 0.0
    %933 = vmatpush2.msra.mxu0 0.0
    %934 = vmatprep.subr.mxu0 0.0
    %935 = vmatpush2.msra.mxu0 0.0
    %936 = vmatprep.subr.mxu0 0.0
    %937 = vmatpush2.msra.mxu0 0.0
    %938 = vmatprep.subr.mxu0 0.0
    %939 = vmatpush2.msra.mxu0 0.0
    %940 = vmatprep.subr.mxu0 0.0
    %941 = vmatpush2.msra.mxu0 0.0
    %942 = vmatprep.subr.mxu0 0.0
    %943 = vmatpush2.msra.mxu0 0.0
    %944 = vmatprep.subr.mxu0 0.0
    %945 = vmatpush2.msra.mxu0 0.0
    %946 = vmatprep.subr.mxu0 0.0
    %947 = vmatpush2.msra.mxu0 0.0
    %948 = vmatprep.subr.mxu0 0.0
    %949 = vmatpush2.msra.mxu0 0.0
    %950 = vmatprep.subr.mxu0 0.0
    %951 = vmatpush2.msra.mxu0 0.0
    %952 = vmatprep.subr.mxu0 0.0
    %953 = vmatpush2.msra.mxu0 0.0
    %954 = vmatprep.subr.mxu0 0.0
    %955 = vmatpush2.msra.mxu0 0.0
    %956 = vmatprep.mubr.f32.mxu0 0.0
    %957 = vmatmul.mubr.f32.gmra.mxu0 %v820
    %v958 = vpop.f32.mrf.mxu0
    %v959 = vadd.f32 0.0, %v958
    %v960 = vpop.f32.mrf.mxu0
    %961 = vdwg.mxu0
    %vm962 = vcmask 261120
    %v964 = vsel %vm962, %v174, 0
    %v967 = vsel %vm962, %v460, 0
    %969 = vmatprep.subr.mxu0 0.0
    %970 = vmatpush1.xpose.msra.mxu0 0.0
    %971 = vmatprep.subr.mxu0 0.0
    %972 = vmatpush1.xpose.msra.mxu0 0.0
    %973 = vmatprep.subr.mxu0 0.0
    %974 = vmatpush1.xpose.msra.mxu0 0.0
    %975 = vmatprep.subr.mxu0 0.0
    %976 = vmatpush1.xpose.msra.mxu0 0.0
    %977 = vmatprep.subr.mxu0 0.0
    %978 = vmatpush1.xpose.msra.mxu0 0.0
    %979 = vmatprep.subr.mxu0 0.0
    %980 = vmatpush1.xpose.msra.mxu0 0.0
    %981 = vmatprep.subr.mxu0 0.0
    %982 = vmatpush1.xpose.msra.mxu0 0.0
    %983 = vmatprep.subr.mxu0 0.0
    %984 = vmatpush1.xpose.msra.mxu0 0.0
    %985 = vmatprep.subr.mxu0 0.0
    %986 = vmatpush1.xpose.msra.mxu0 0.0
    %987 = vmatprep.subr.mxu0 0.0
    %988 = vmatpush1.xpose.msra.mxu0 0.0
    %989 = vmatprep.subr.mxu0 0.0
    %990 = vmatpush1.xpose.msra.mxu0 0.0
    %991 = vmatprep.subr.mxu0 0.0
    %992 = vmatpush1.xpose.msra.mxu0 0.0
    %993 = vmatprep.subr.mxu0 0.0
    %994 = vmatpush1.xpose.msra.mxu0 0.0
    %995 = vmatprep.subr.mxu0 0.0
    %996 = vmatpush1.xpose.msra.mxu0 0.0
    %997 = vmatprep.subr.mxu0 0.0
    %998 = vmatpush1.xpose.msra.mxu0 0.0
    %999 = vmatprep.subr.mxu0 0.0
    %1000 = vmatpush1.xpose.msra.mxu0 %v967
    %1001 = vmatprep.subr.mxu0 0.0
    %1002 = vmatpush2.xpose.msra.mxu0 0.0
    %1003 = vmatprep.subr.mxu0 0.0
    %1004 = vmatpush2.xpose.msra.mxu0 0.0
    %1005 = vmatprep.subr.mxu0 0.0
    %1006 = vmatpush2.xpose.msra.mxu0 0.0
    %1007 = vmatprep.subr.mxu0 0.0
    %1008 = vmatpush2.xpose.msra.mxu0 0.0
    %1009 = vmatprep.subr.mxu0 0.0
    %1010 = vmatpush2.xpose.msra.mxu0 0.0
    %1011 = vmatprep.subr.mxu0 0.0
    %1012 = vmatpush2.xpose.msra.mxu0 0.0
    %1013 = vmatprep.subr.mxu0 0.0
    %1014 = vmatpush2.xpose.msra.mxu0 0.0
    %1015 = vmatprep.subr.mxu0 0.0
    %1016 = vmatpush2.xpose.msra.mxu0 0.0
    %1017 = vmatprep.subr.mxu0 0.0
    %1018 = vmatpush2.xpose.msra.mxu0 0.0
    %1019 = vmatprep.subr.mxu0 0.0
    %1020 = vmatpush2.xpose.msra.mxu0 0.0
    %1021 = vmatprep.subr.mxu0 0.0
    %1022 = vmatpush2.xpose.msra.mxu0 0.0
    %1023 = vmatprep.subr.mxu0 0.0
    %1024 = vmatpush2.xpose.msra.mxu0 0.0
    %1025 = vmatprep.subr.mxu0 0.0
    %1026 = vmatpush2.xpose.msra.mxu0 0.0
    %1027 = vmatprep.subr.mxu0 0.0
    %1028 = vmatpush2.xpose.msra.mxu0 0.0
    %1029 = vmatprep.subr.mxu0 0.0
    %1030 = vmatpush2.xpose.msra.mxu0 0.0
    %1031 = vmatprep.subr.mxu0 0.0
    %1032 = vmatpush2.xpose.msra.mxu0 0.0
    %1033 = vmatprep.mubr.f32.mxu0 0.0
    %1034 = vmatmul.mubr.f32.gmra.mxu0 %v964
    %v1035 = vpop.f32.mrf.mxu0
    %v1036 = vadd.f32 0.0, %v1035
    %v1037 = vpop.f32.mrf.mxu0
    %1038 = vdwg.mxu0
    %v1040 = vsel %vm962, %v244, 0
    %v1043 = vsel %vm962, %v530, 0
    %1045 = vmatprep.subr.mxu0 0.0
    %1046 = vmatpush1.xpose.msra.mxu0 0.0
    %1047 = vmatprep.subr.mxu0 0.0
    %1048 = vmatpush1.xpose.msra.mxu0 0.0
    %1049 = vmatprep.subr.mxu0 0.0
    %1050 = vmatpush1.xpose.msra.mxu0 0.0
    %1051 = vmatprep.subr.mxu0 0.0
    %1052 = vmatpush1.xpose.msra.mxu0 0.0
    %1053 = vmatprep.subr.mxu0 0.0
    %1054 = vmatpush1.xpose.msra.mxu0 0.0
    %1055 = vmatprep.subr.mxu0 0.0
    %1056 = vmatpush1.xpose.msra.mxu0 0.0
    %1057 = vmatprep.subr.mxu0 0.0
    %1058 = vmatpush1.xpose.msra.mxu0 0.0
    %1059 = vmatprep.subr.mxu0 0.0
    %1060 = vmatpush1.xpose.msra.mxu0 0.0
    %1061 = vmatprep.subr.mxu0 0.0
    %1062 = vmatpush1.xpose.msra.mxu0 0.0
    %1063 = vmatprep.subr.mxu0 0.0
    %1064 = vmatpush1.xpose.msra.mxu0 0.0
    %1065 = vmatprep.subr.mxu0 0.0
    %1066 = vmatpush1.xpose.msra.mxu0 0.0
    %1067 = vmatprep.subr.mxu0 0.0
    %1068 = vmatpush1.xpose.msra.mxu0 0.0
    %1069 = vmatprep.subr.mxu0 0.0
    %1070 = vmatpush1.xpose.msra.mxu0 0.0
    %1071 = vmatprep.subr.mxu0 0.0
    %1072 = vmatpush1.xpose.msra.mxu0 0.0
    %1073 = vmatprep.subr.mxu0 0.0
    %1074 = vmatpush1.xpose.msra.mxu0 0.0
    %1075 = vmatprep.subr.mxu0 0.0
    %1076 = vmatpush1.xpose.msra.mxu0 %v1043
    %1077 = vmatprep.subr.mxu0 0.0
    %1078 = vmatpush2.xpose.msra.mxu0 0.0
    %1079 = vmatprep.subr.mxu0 0.0
    %1080 = vmatpush2.xpose.msra.mxu0 0.0
    %1081 = vmatprep.subr.mxu0 0.0
    %1082 = vmatpush2.xpose.msra.mxu0 0.0
    %1083 = vmatprep.subr.mxu0 0.0
    %1084 = vmatpush2.xpose.msra.mxu0 0.0
    %1085 = vmatprep.subr.mxu0 0.0
    %1086 = vmatpush2.xpose.msra.mxu0 0.0
    %1087 = vmatprep.subr.mxu0 0.0
    %1088 = vmatpush2.xpose.msra.mxu0 0.0
    %1089 = vmatprep.subr.mxu0 0.0
    %1090 = vmatpush2.xpose.msra.mxu0 0.0
    %1091 = vmatprep.subr.mxu0 0.0
    %1092 = vmatpush2.xpose.msra.mxu0 0.0
    %1093 = vmatprep.subr.mxu0 0.0
    %1094 = vmatpush2.xpose.msra.mxu0 0.0
    %1095 = vmatprep.subr.mxu0 0.0
    %1096 = vmatpush2.xpose.msra.mxu0 0.0
    %1097 = vmatprep.subr.mxu0 0.0
    %1098 = vmatpush2.xpose.msra.mxu0 0.0
    %1099 = vmatprep.subr.mxu0 0.0
    %1100 = vmatpush2.xpose.msra.mxu0 0.0
    %1101 = vmatprep.subr.mxu0 0.0
    %1102 = vmatpush2.xpose.msra.mxu0 0.0
    %1103 = vmatprep.subr.mxu0 0.0
    %1104 = vmatpush2.xpose.msra.mxu0 0.0
    %1105 = vmatprep.subr.mxu0 0.0
    %1106 = vmatpush2.xpose.msra.mxu0 0.0
    %1107 = vmatprep.subr.mxu0 0.0
    %1108 = vmatpush2.xpose.msra.mxu0 0.0
    %1109 = vmatprep.mubr.f32.mxu0 0.0
    %1110 = vmatmul.mubr.f32.gmra.mxu0 %v1040
    %v1111 = vpop.f32.mrf.mxu0
    %v1112 = vadd.f32 0.0, %v1111
    %v1113 = vpop.f32.mrf.mxu0
    %1114 = vdwg.mxu0
    %v1116 = vsel %vm962, %v317, 0
    %v1119 = vsel %vm962, %v603, 0
    %1121 = vmatprep.subr.mxu0 0.0
    %1122 = vmatpush1.xpose.msra.mxu0 0.0
    %1123 = vmatprep.subr.mxu0 0.0
    %1124 = vmatpush1.xpose.msra.mxu0 0.0
    %1125 = vmatprep.subr.mxu0 0.0
    %1126 = vmatpush1.xpose.msra.mxu0 0.0
    %1127 = vmatprep.subr.mxu0 0.0
    %1128 = vmatpush1.xpose.msra.mxu0 0.0
    %1129 = vmatprep.subr.mxu0 0.0
    %1130 = vmatpush1.xpose.msra.mxu0 0.0
    %1131 = vmatprep.subr.mxu0 0.0
    %1132 = vmatpush1.xpose.msra.mxu0 0.0
    %1133 = vmatprep.subr.mxu0 0.0
    %1134 = vmatpush1.xpose.msra.mxu0 0.0
    %1135 = vmatprep.subr.mxu0 0.0
    %1136 = vmatpush1.xpose.msra.mxu0 0.0
    %1137 = vmatprep.subr.mxu0 0.0
    %1138 = vmatpush1.xpose.msra.mxu0 0.0
    %1139 = vmatprep.subr.mxu0 0.0
    %1140 = vmatpush1.xpose.msra.mxu0 0.0
    %1141 = vmatprep.subr.mxu0 0.0
    %1142 = vmatpush1.xpose.msra.mxu0 0.0
    %1143 = vmatprep.subr.mxu0 0.0
    %1144 = vmatpush1.xpose.msra.mxu0 0.0
    %1145 = vmatprep.subr.mxu0 0.0
    %1146 = vmatpush1.xpose.msra.mxu0 0.0
    %1147 = vmatprep.subr.mxu0 0.0
    %1148 = vmatpush1.xpose.msra.mxu0 0.0
    %1149 = vmatprep.subr.mxu0 0.0
    %1150 = vmatpush1.xpose.msra.mxu0 0.0
    %1151 = vmatprep.subr.mxu0 0.0
    %1152 = vmatpush1.xpose.msra.mxu0 %v1119
    %1153 = vmatprep.subr.mxu0 0.0
    %1154 = vmatpush2.xpose.msra.mxu0 0.0
    %1155 = vmatprep.subr.mxu0 0.0
    %1156 = vmatpush2.xpose.msra.mxu0 0.0
    %1157 = vmatprep.subr.mxu0 0.0
    %1158 = vmatpush2.xpose.msra.mxu0 0.0
    %1159 = vmatprep.subr.mxu0 0.0
    %1160 = vmatpush2.xpose.msra.mxu0 0.0
    %1161 = vmatprep.subr.mxu0 0.0
    %1162 = vmatpush2.xpose.msra.mxu0 0.0
    %1163 = vmatprep.subr.mxu0 0.0
    %1164 = vmatpush2.xpose.msra.mxu0 0.0
    %1165 = vmatprep.subr.mxu0 0.0
    %1166 = vmatpush2.xpose.msra.mxu0 0.0
    %1167 = vmatprep.subr.mxu0 0.0
    %1168 = vmatpush2.xpose.msra.mxu0 0.0
    %1169 = vmatprep.subr.mxu0 0.0
    %1170 = vmatpush2.xpose.msra.mxu0 0.0
    %1171 = vmatprep.subr.mxu0 0.0
    %1172 = vmatpush2.xpose.msra.mxu0 0.0
    %1173 = vmatprep.subr.mxu0 0.0
    %1174 = vmatpush2.xpose.msra.mxu0 0.0
    %1175 = vmatprep.subr.mxu0 0.0
    %1176 = vmatpush2.xpose.msra.mxu0 0.0
    %1177 = vmatprep.subr.mxu0 0.0
    %1178 = vmatpush2.xpose.msra.mxu0 0.0
    %1179 = vmatprep.subr.mxu0 0.0
    %1180 = vmatpush2.xpose.msra.mxu0 0.0
    %1181 = vmatprep.subr.mxu0 0.0
    %1182 = vmatpush2.xpose.msra.mxu0 0.0
    %1183 = vmatprep.subr.mxu0 0.0
    %1184 = vmatpush2.xpose.msra.mxu0 0.0
    %1185 = vmatprep.mubr.f32.mxu0 0.0
    %1186 = vmatmul.mubr.f32.gmra.mxu0 %v1116
    %v1187 = vpop.f32.mrf.mxu0
    %v1188 = vadd.f32 0.0, %v1187
    %v1189 = vpop.f32.mrf.mxu0
    %1190 = vdwg.mxu0
    %v1192 = vsel %vm962, %v387, 0
    %v1195 = vsel %vm962, %v673, 0
    %1197 = vmatprep.subr.mxu0 0.0
    %1198 = vmatpush1.xpose.msra.mxu0 0.0
    %1199 = vmatprep.subr.mxu0 0.0
    %1200 = vmatpush1.xpose.msra.mxu0 0.0
    %1201 = vmatprep.subr.mxu0 0.0
    %1202 = vmatpush1.xpose.msra.mxu0 0.0
    %1203 = vmatprep.subr.mxu0 0.0
    %1204 = vmatpush1.xpose.msra.mxu0 0.0
    %1205 = vmatprep.subr.mxu0 0.0
    %1206 = vmatpush1.xpose.msra.mxu0 0.0
    %1207 = vmatprep.subr.mxu0 0.0
    %1208 = vmatpush1.xpose.msra.mxu0 0.0
    %1209 = vmatprep.subr.mxu0 0.0
    %1210 = vmatpush1.xpose.msra.mxu0 0.0
    %1211 = vmatprep.subr.mxu0 0.0
    %1212 = vmatpush1.xpose.msra.mxu0 0.0
    %1213 = vmatprep.subr.mxu0 0.0
    %1214 = vmatpush1.xpose.msra.mxu0 0.0
    %1215 = vmatprep.subr.mxu0 0.0
    %1216 = vmatpush1.xpose.msra.mxu0 0.0
    %1217 = vmatprep.subr.mxu0 0.0
    %1218 = vmatpush1.xpose.msra.mxu0 0.0
    %1219 = vmatprep.subr.mxu0 0.0
    %1220 = vmatpush1.xpose.msra.mxu0 0.0
    %1221 = vmatprep.subr.mxu0 0.0
    %1222 = vmatpush1.xpose.msra.mxu0 0.0
    %1223 = vmatprep.subr.mxu0 0.0
    %1224 = vmatpush1.xpose.msra.mxu0 0.0
    %1225 = vmatprep.subr.mxu0 0.0
    %1226 = vmatpush1.xpose.msra.mxu0 0.0
    %1227 = vmatprep.subr.mxu0 0.0
    %1228 = vmatpush1.xpose.msra.mxu0 %v1195
    %1229 = vmatprep.subr.mxu0 0.0
    %1230 = vmatpush2.xpose.msra.mxu0 0.0
    %1231 = vmatprep.subr.mxu0 0.0
    %1232 = vmatpush2.xpose.msra.mxu0 0.0
    %1233 = vmatprep.subr.mxu0 0.0
    %1234 = vmatpush2.xpose.msra.mxu0 0.0
    %1235 = vmatprep.subr.mxu0 0.0
    %1236 = vmatpush2.xpose.msra.mxu0 0.0
    %1237 = vmatprep.subr.mxu0 0.0
    %1238 = vmatpush2.xpose.msra.mxu0 0.0
    %1239 = vmatprep.subr.mxu0 0.0
    %1240 = vmatpush2.xpose.msra.mxu0 0.0
    %1241 = vmatprep.subr.mxu0 0.0
    %1242 = vmatpush2.xpose.msra.mxu0 0.0
    %1243 = vmatprep.subr.mxu0 0.0
    %1244 = vmatpush2.xpose.msra.mxu0 0.0
    %1245 = vmatprep.subr.mxu0 0.0
    %1246 = vmatpush2.xpose.msra.mxu0 0.0
    %1247 = vmatprep.subr.mxu0 0.0
    %1248 = vmatpush2.xpose.msra.mxu0 0.0
    %1249 = vmatprep.subr.mxu0 0.0
    %1250 = vmatpush2.xpose.msra.mxu0 0.0
    %1251 = vmatprep.subr.mxu0 0.0
    %1252 = vmatpush2.xpose.msra.mxu0 0.0
    %1253 = vmatprep.subr.mxu0 0.0
    %1254 = vmatpush2.xpose.msra.mxu0 0.0
    %1255 = vmatprep.subr.mxu0 0.0
    %1256 = vmatpush2.xpose.msra.mxu0 0.0
    %1257 = vmatprep.subr.mxu0 0.0
    %1258 = vmatpush2.xpose.msra.mxu0 0.0
    %1259 = vmatprep.subr.mxu0 0.0
    %1260 = vmatpush2.xpose.msra.mxu0 0.0
    %1261 = vmatprep.mubr.f32.mxu0 0.0
    %1262 = vmatmul.mubr.f32.gmra.mxu0 %v1192
    %v1263 = vpop.f32.mrf.mxu0
    %v1264 = vadd.f32 0.0, %v1263
    %v1265 = vpop.f32.mrf.mxu0
    %1266 = vdwg.mxu0
    %vm1267 = vcmask 64512
    %v1268 = vsel %vm1267, %v1036, -inf
    %1269 = vmax.xlane.f32.xlu0 %v1268
    %v1270 = vpop.xlane.xlu0 %1269
    %v1271 = vsel %vm1267, %v1112, -inf
    %1272 = vmax.xlane.f32.xlu0 %v1271
    %v1273 = vpop.xlane.xlu0 %1272
    %v1274 = vsel %vm1267, %v1188, -inf
    %1275 = vmax.xlane.f32.xlu0 %v1274
    %v1276 = vpop.xlane.xlu0 %1275
    %v1277 = vsel %vm1267, %v1264, -inf
    %1278 = vmax.xlane.f32.xlu0 %v1277
    %v1279 = vpop.xlane.xlu0 %1278
    %v1280 = vsub.f32 %v1036, %v1270
    %v1281 = vsub.f32 %v1112, %v1273
    %v1282 = vsub.f32 %v1188, %v1276
    %v1283 = vsub.f32 %v1264, %v1279
    %v1284 = vmul.f32 %v1280, 1.442695
    %v1285 = vpow.pop %v1284
    %v1286 = vmul.f32 %v1281, 1.442695
    %v1287 = vpow.pop %v1286
    %v1288 = vmul.f32 %v1282, 1.442695
    %v1289 = vpow.pop %v1288
    %v1290 = vmul.f32 %v1283, 1.442695
    %v1291 = vpow.pop %v1290
    %v1292 = vsel %vm1267, %v1285, 0.0
    %1293 = vadd.xlane.f32.xlu0 %v1292
    %v1294 = vpop.xlane.xlu0 %1293
    %v1295 = vsel %vm1267, %v1287, 0.0
    %1296 = vadd.xlane.f32.xlu0 %v1295
    %v1297 = vpop.xlane.xlu0 %1296
    %v1298 = vsel %vm1267, %v1289, 0.0
    %1299 = vadd.xlane.f32.xlu0 %v1298
    %v1300 = vpop.xlane.xlu0 %1299
    %v1301 = vsel %vm1267, %v1291, 0.0
    %1302 = vadd.xlane.f32.xlu0 %v1301
    %v1303 = vpop.xlane.xlu0 %1302
    %v1304 = vrcp.pop %v1294
    %v1305 = vrcp.pop %v1297
    %v1306 = vrcp.pop %v1300
    %v1307 = vrcp.pop %v1303
    %v1308 = vmul.f32 %v1285, %v1304
    %v1309 = vmul.f32 %v1287, %v1305
    %v1310 = vmul.f32 %v1289, %v1306
    %v1311 = vmul.f32 %v1291, %v1307
    %1312 = vst.msk [vmem:[#allocation9] sm:$0xff] %vm1267, %v1308
    %1313 = vst.msk [vmem:[#allocation9 + $0x8] sm:$0xff] %vm1267, %v1309
    %1314 = vst.msk [vmem:[#allocation9 + $0x10] sm:$0xff] %vm1267, %v1310
    %1315 = vst.msk [vmem:[#allocation9 + $0x18] sm:$0xff] %vm1267, %v1311
    %v1317 = vsel %vm1267, %v1308, 0
    %1319 = vmatprep.subr.mxu0 0.0
    %1320 = vmatpush1.msra.mxu0 0.0
    %1321 = vmatprep.subr.mxu0 0.0
    %1322 = vmatpush1.msra.mxu0 0.0
    %1323 = vmatprep.subr.mxu0 0.0
    %1324 = vmatpush1.msra.mxu0 0.0
    %1325 = vmatprep.subr.mxu0 0.0
    %1326 = vmatpush1.msra.mxu0 0.0
    %1327 = vmatprep.subr.mxu0 0.0
    %1328 = vmatpush1.msra.mxu0 0.0
    %1329 = vmatprep.subr.mxu0 0.0
    %1330 = vmatpush1.msra.mxu0 0.0
    %1331 = vmatprep.subr.mxu0 0.0
    %1332 = vmatpush1.msra.mxu0 0.0
    %1333 = vmatprep.subr.mxu0 0.0
    %1334 = vmatpush1.msra.mxu0 0.0
    %1335 = vmatprep.subr.mxu0 0.0
    %1336 = vmatpush1.msra.mxu0 0.0
    %1337 = vmatprep.subr.mxu0 0.0
    %1338 = vmatpush1.msra.mxu0 0.0
    %1339 = vmatprep.subr.mxu0 0.0
    %1340 = vmatpush1.msra.mxu0 0.0
    %1341 = vmatprep.subr.mxu0 0.0
    %1342 = vmatpush1.msra.mxu0 0.0
    %1343 = vmatprep.subr.mxu0 0.0
    %1344 = vmatpush1.msra.mxu0 0.0
    %1345 = vmatprep.subr.mxu0 0.0
    %1346 = vmatpush1.msra.mxu0 0.0
    %1347 = vmatprep.subr.mxu0 0.0
    %1348 = vmatpush1.msra.mxu0 0.0
    %1349 = vmatprep.subr.mxu0 0.0
    %1350 = vmatpush1.msra.mxu0 %v746
    %1351 = vmatprep.subr.mxu0 0.0
    %1352 = vmatpush2.msra.mxu0 0.0
    %1353 = vmatprep.subr.mxu0 0.0
    %1354 = vmatpush2.msra.mxu0 0.0
    %1355 = vmatprep.subr.mxu0 0.0
    %1356 = vmatpush2.msra.mxu0 0.0
    %1357 = vmatprep.subr.mxu0 0.0
    %1358 = vmatpush2.msra.mxu0 0.0
    %1359 = vmatprep.subr.mxu0 0.0
    %1360 = vmatpush2.msra.mxu0 0.0
    %1361 = vmatprep.subr.mxu0 0.0
    %1362 = vmatpush2.msra.mxu0 0.0
    %1363 = vmatprep.subr.mxu0 0.0
    %1364 = vmatpush2.msra.mxu0 0.0
    %1365 = vmatprep.subr.mxu0 0.0
    %1366 = vmatpush2.msra.mxu0 0.0
    %1367 = vmatprep.subr.mxu0 0.0
    %1368 = vmatpush2.msra.mxu0 0.0
    %1369 = vmatprep.subr.mxu0 0.0
    %1370 = vmatpush2.msra.mxu0 0.0
    %1371 = vmatprep.subr.mxu0 0.0
    %1372 = vmatpush2.msra.mxu0 0.0
    %1373 = vmatprep.subr.mxu0 0.0
    %1374 = vmatpush2.msra.mxu0 0.0
    %1375 = vmatprep.subr.mxu0 0.0
    %1376 = vmatpush2.msra.mxu0 0.0
    %1377 = vmatprep.subr.mxu0 0.0
    %1378 = vmatpush2.msra.mxu0 0.0
    %1379 = vmatprep.subr.mxu0 0.0
    %1380 = vmatpush2.msra.mxu0 0.0
    %1381 = vmatprep.subr.mxu0 0.0
    %1382 = vmatpush2.msra.mxu0 0.0
    %1383 = vmatprep.mubr.f32.mxu0 0.0
    %1384 = vmatmul.mubr.f32.gmra.mxu0 %v1317
    %v1385 = vpop.f32.mrf.mxu0
    %v1386 = vadd.f32 0.0, %v1385
    %v1387 = vpop.f32.mrf.mxu0
    %1388 = vdwg.mxu0
    %v1390 = vsel %vm1267, %v1309, 0
    %1392 = vmatprep.subr.mxu0 0.0
    %1393 = vmatpush1.msra.mxu0 0.0
    %1394 = vmatprep.subr.mxu0 0.0
    %1395 = vmatpush1.msra.mxu0 0.0
    %1396 = vmatprep.subr.mxu0 0.0
    %1397 = vmatpush1.msra.mxu0 0.0
    %1398 = vmatprep.subr.mxu0 0.0
    %1399 = vmatpush1.msra.mxu0 0.0
    %1400 = vmatprep.subr.mxu0 0.0
    %1401 = vmatpush1.msra.mxu0 0.0
    %1402 = vmatprep.subr.mxu0 0.0
    %1403 = vmatpush1.msra.mxu0 0.0
    %1404 = vmatprep.subr.mxu0 0.0
    %1405 = vmatpush1.msra.mxu0 0.0
    %1406 = vmatprep.subr.mxu0 0.0
    %1407 = vmatpush1.msra.mxu0 0.0
    %1408 = vmatprep.subr.mxu0 0.0
    %1409 = vmatpush1.msra.mxu0 0.0
    %1410 = vmatprep.subr.mxu0 0.0
    %1411 = vmatpush1.msra.mxu0 0.0
    %1412 = vmatprep.subr.mxu0 0.0
    %1413 = vmatpush1.msra.mxu0 0.0
    %1414 = vmatprep.subr.mxu0 0.0
    %1415 = vmatpush1.msra.mxu0 0.0
    %1416 = vmatprep.subr.mxu0 0.0
    %1417 = vmatpush1.msra.mxu0 0.0
    %1418 = vmatprep.subr.mxu0 0.0
    %1419 = vmatpush1.msra.mxu0 0.0
    %1420 = vmatprep.subr.mxu0 0.0
    %1421 = vmatpush1.msra.mxu0 0.0
    %1422 = vmatprep.subr.mxu0 0.0
    %1423 = vmatpush1.msra.mxu0 %v816
    %1424 = vmatprep.subr.mxu0 0.0
    %1425 = vmatpush2.msra.mxu0 0.0
    %1426 = vmatprep.subr.mxu0 0.0
    %1427 = vmatpush2.msra.mxu0 0.0
    %1428 = vmatprep.subr.mxu0 0.0
    %1429 = vmatpush2.msra.mxu0 0.0
    %1430 = vmatprep.subr.mxu0 0.0
    %1431 = vmatpush2.msra.mxu0 0.0
    %1432 = vmatprep.subr.mxu0 0.0
    %1433 = vmatpush2.msra.mxu0 0.0
    %1434 = vmatprep.subr.mxu0 0.0
    %1435 = vmatpush2.msra.mxu0 0.0
    %1436 = vmatprep.subr.mxu0 0.0
    %1437 = vmatpush2.msra.mxu0 0.0
    %1438 = vmatprep.subr.mxu0 0.0
    %1439 = vmatpush2.msra.mxu0 0.0
    %1440 = vmatprep.subr.mxu0 0.0
    %1441 = vmatpush2.msra.mxu0 0.0
    %1442 = vmatprep.subr.mxu0 0.0
    %1443 = vmatpush2.msra.mxu0 0.0
    %1444 = vmatprep.subr.mxu0 0.0
    %1445 = vmatpush2.msra.mxu0 0.0
    %1446 = vmatprep.subr.mxu0 0.0
    %1447 = vmatpush2.msra.mxu0 0.0
    %1448 = vmatprep.subr.mxu0 0.0
    %1449 = vmatpush2.msra.mxu0 0.0
    %1450 = vmatprep.subr.mxu0 0.0
    %1451 = vmatpush2.msra.mxu0 0.0
    %1452 = vmatprep.subr.mxu0 0.0
    %1453 = vmatpush2.msra.mxu0 0.0
    %1454 = vmatprep.subr.mxu0 0.0
    %1455 = vmatpush2.msra.mxu0 0.0
    %1456 = vmatprep.mubr.f32.mxu0 0.0
    %1457 = vmatmul.mubr.f32.gmra.mxu0 %v1390
    %v1458 = vpop.f32.mrf.mxu0
    %v1459 = vadd.f32 0.0, %v1458
    %v1460 = vpop.f32.mrf.mxu0
    %1461 = vdwg.mxu0
    %v1463 = vsel %vm1267, %v1310, 0
    %1465 = vmatprep.subr.mxu0 0.0
    %1466 = vmatpush1.msra.mxu0 0.0
    %1467 = vmatprep.subr.mxu0 0.0
    %1468 = vmatpush1.msra.mxu0 0.0
    %1469 = vmatprep.subr.mxu0 0.0
    %1470 = vmatpush1.msra.mxu0 0.0
    %1471 = vmatprep.subr.mxu0 0.0
    %1472 = vmatpush1.msra.mxu0 0.0
    %1473 = vmatprep.subr.mxu0 0.0
    %1474 = vmatpush1.msra.mxu0 0.0
    %1475 = vmatprep.subr.mxu0 0.0
    %1476 = vmatpush1.msra.mxu0 0.0
    %1477 = vmatprep.subr.mxu0 0.0
    %1478 = vmatpush1.msra.mxu0 0.0
    %1479 = vmatprep.subr.mxu0 0.0
    %1480 = vmatpush1.msra.mxu0 0.0
    %1481 = vmatprep.subr.mxu0 0.0
    %1482 = vmatpush1.msra.mxu0 0.0
    %1483 = vmatprep.subr.mxu0 0.0
    %1484 = vmatpush1.msra.mxu0 0.0
    %1485 = vmatprep.subr.mxu0 0.0
    %1486 = vmatpush1.msra.mxu0 0.0
    %1487 = vmatprep.subr.mxu0 0.0
    %1488 = vmatpush1.msra.mxu0 0.0
    %1489 = vmatprep.subr.mxu0 0.0
    %1490 = vmatpush1.msra.mxu0 0.0
    %1491 = vmatprep.subr.mxu0 0.0
    %1492 = vmatpush1.msra.mxu0 0.0
    %1493 = vmatprep.subr.mxu0 0.0
    %1494 = vmatpush1.msra.mxu0 0.0
    %1495 = vmatprep.subr.mxu0 0.0
    %1496 = vmatpush1.msra.mxu0 %v889
    %1497 = vmatprep.subr.mxu0 0.0
    %1498 = vmatpush2.msra.mxu0 0.0
    %1499 = vmatprep.subr.mxu0 0.0
    %1500 = vmatpush2.msra.mxu0 0.0
    %1501 = vmatprep.subr.mxu0 0.0
    %1502 = vmatpush2.msra.mxu0 0.0
    %1503 = vmatprep.subr.mxu0 0.0
    %1504 = vmatpush2.msra.mxu0 0.0
    %1505 = vmatprep.subr.mxu0 0.0
    %1506 = vmatpush2.msra.mxu0 0.0
    %1507 = vmatprep.subr.mxu0 0.0
    %1508 = vmatpush2.msra.mxu0 0.0
    %1509 = vmatprep.subr.mxu0 0.0
    %1510 = vmatpush2.msra.mxu0 0.0
    %1511 = vmatprep.subr.mxu0 0.0
    %1512 = vmatpush2.msra.mxu0 0.0
    %1513 = vmatprep.subr.mxu0 0.0
    %1514 = vmatpush2.msra.mxu0 0.0
    %1515 = vmatprep.subr.mxu0 0.0
    %1516 = vmatpush2.msra.mxu0 0.0
    %1517 = vmatprep.subr.mxu0 0.0
    %1518 = vmatpush2.msra.mxu0 0.0
    %1519 = vmatprep.subr.mxu0 0.0
    %1520 = vmatpush2.msra.mxu0 0.0
    %1521 = vmatprep.subr.mxu0 0.0
    %1522 = vmatpush2.msra.mxu0 0.0
    %1523 = vmatprep.subr.mxu0 0.0
    %1524 = vmatpush2.msra.mxu0 0.0
    %1525 = vmatprep.subr.mxu0 0.0
    %1526 = vmatpush2.msra.mxu0 0.0
    %1527 = vmatprep.subr.mxu0 0.0
    %1528 = vmatpush2.msra.mxu0 0.0
    %1529 = vmatprep.mubr.f32.mxu0 0.0
    %1530 = vmatmul.mubr.f32.gmra.mxu0 %v1463
    %v1531 = vpop.f32.mrf.mxu0
    %v1532 = vadd.f32 0.0, %v1531
    %v1533 = vpop.f32.mrf.mxu0
    %1534 = vdwg.mxu0
    %v1536 = vsel %vm1267, %v1311, 0
    %1538 = vmatprep.subr.mxu0 0.0
    %1539 = vmatpush1.msra.mxu0 0.0
    %1540 = vmatprep.subr.mxu0 0.0
    %1541 = vmatpush1.msra.mxu0 0.0
    %1542 = vmatprep.subr.mxu0 0.0
    %1543 = vmatpush1.msra.mxu0 0.0
    %1544 = vmatprep.subr.mxu0 0.0
    %1545 = vmatpush1.msra.mxu0 0.0
    %1546 = vmatprep.subr.mxu0 0.0
    %1547 = vmatpush1.msra.mxu0 0.0
    %1548 = vmatprep.subr.mxu0 0.0
    %1549 = vmatpush1.msra.mxu0 0.0
    %1550 = vmatprep.subr.mxu0 0.0
    %1551 = vmatpush1.msra.mxu0 0.0
    %1552 = vmatprep.subr.mxu0 0.0
    %1553 = vmatpush1.msra.mxu0 0.0
    %1554 = vmatprep.subr.mxu0 0.0
    %1555 = vmatpush1.msra.mxu0 0.0
    %1556 = vmatprep.subr.mxu0 0.0
    %1557 = vmatpush1.msra.mxu0 0.0
    %1558 = vmatprep.subr.mxu0 0.0
    %1559 = vmatpush1.msra.mxu0 0.0
    %1560 = vmatprep.subr.mxu0 0.0
    %1561 = vmatpush1.msra.mxu0 0.0
    %1562 = vmatprep.subr.mxu0 0.0
    %1563 = vmatpush1.msra.mxu0 0.0
    %1564 = vmatprep.subr.mxu0 0.0
    %1565 = vmatpush1.msra.mxu0 0.0
    %1566 = vmatprep.subr.mxu0 0.0
    %1567 = vmatpush1.msra.mxu0 0.0
    %1568 = vmatprep.subr.mxu0 0.0
    %1569 = vmatpush1.msra.mxu0 %v959
    %1570 = vmatprep.subr.mxu0 0.0
    %1571 = vmatpush2.msra.mxu0 0.0
    %1572 = vmatprep.subr.mxu0 0.0
    %1573 = vmatpush2.msra.mxu0 0.0
    %1574 = vmatprep.subr.mxu0 0.0
    %1575 = vmatpush2.msra.mxu0 0.0
    %1576 = vmatprep.subr.mxu0 0.0
    %1577 = vmatpush2.msra.mxu0 0.0
    %1578 = vmatprep.subr.mxu0 0.0
    %1579 = vmatpush2.msra.mxu0 0.0
    %1580 = vmatprep.subr.mxu0 0.0
    %1581 = vmatpush2.msra.mxu0 0.0
    %1582 = vmatprep.subr.mxu0 0.0
    %1583 = vmatpush2.msra.mxu0 0.0
    %1584 = vmatprep.subr.mxu0 0.0
    %1585 = vmatpush2.msra.mxu0 0.0
    %1586 = vmatprep.subr.mxu0 0.0
    %1587 = vmatpush2.msra.mxu0 0.0
    %1588 = vmatprep.subr.mxu0 0.0
    %1589 = vmatpush2.msra.mxu0 0.0
    %1590 = vmatprep.subr.mxu0 0.0
    %1591 = vmatpush2.msra.mxu0 0.0
    %1592 = vmatprep.subr.mxu0 0.0
    %1593 = vmatpush2.msra.mxu0 0.0
    %1594 = vmatprep.subr.mxu0 0.0
    %1595 = vmatpush2.msra.mxu0 0.0
    %1596 = vmatprep.subr.mxu0 0.0
    %1597 = vmatpush2.msra.mxu0 0.0
    %1598 = vmatprep.subr.mxu0 0.0
    %1599 = vmatpush2.msra.mxu0 0.0
    %1600 = vmatprep.subr.mxu0 0.0
    %1601 = vmatpush2.msra.mxu0 0.0
    %1602 = vmatprep.mubr.f32.mxu0 0.0
    %1603 = vmatmul.mubr.f32.gmra.mxu0 %v1536
    %v1604 = vpop.f32.mrf.mxu0
    %v1605 = vadd.f32 0.0, %v1604
    %v1606 = vpop.f32.mrf.mxu0
    %1607 = vdwg.mxu0
    %v1609 = vsel %vm962, %v1386, 0
    %1611 = vmatprep.subr.mxu0 0.0
    %1612 = vmatpush1.msra.mxu0 0.0
    %1613 = vmatprep.subr.mxu0 0.0
    %1614 = vmatpush1.msra.mxu0 0.0
    %1615 = vmatprep.subr.mxu0 0.0
    %1616 = vmatpush1.msra.mxu0 0.0
    %1617 = vmatprep.subr.mxu0 0.0
    %1618 = vmatpush1.msra.mxu0 0.0
    %1619 = vmatprep.subr.mxu0 0.0
    %1620 = vmatpush1.msra.mxu0 0.0
    %1621 = vmatprep.subr.mxu0 0.0
    %1622 = vmatpush1.msra.mxu0 0.0
    %1623 = vmatprep.subr.mxu0 0.0
    %1624 = vmatpush1.msra.mxu0 0.0
    %1625 = vmatprep.subr.mxu0 0.0
    %1626 = vmatpush1.msra.mxu0 0.0
    %1627 = vmatprep.subr.mxu0 0.0
    %1628 = vmatpush1.msra.mxu0 0.0
    %1629 = vmatprep.subr.mxu0 0.0
    %1630 = vmatpush1.msra.mxu0 0.0
    %1631 = vmatprep.subr.mxu0 0.0
    %1632 = vmatpush1.msra.mxu0 0.0
    %1633 = vmatprep.subr.mxu0 0.0
    %1634 = vmatpush1.msra.mxu0 0.0
    %1635 = vmatprep.subr.mxu0 0.0
    %1636 = vmatpush1.msra.mxu0 %v98
    %1637 = vmatprep.subr.mxu0 0.0
    %1638 = vmatpush1.msra.mxu0 %v97
    %1639 = vmatprep.subr.mxu0 0.0
    %1640 = vmatpush1.msra.mxu0 %v96
    %1641 = vmatprep.subr.mxu0 0.0
    %1642 = vmatpush1.msra.mxu0 %v95
    %1643 = vmatprep.subr.mxu0 0.0
    %1644 = vmatpush2.msra.mxu0 0.0
    %1645 = vmatprep.subr.mxu0 0.0
    %1646 = vmatpush2.msra.mxu0 0.0
    %1647 = vmatprep.subr.mxu0 0.0
    %1648 = vmatpush2.msra.mxu0 0.0
    %1649 = vmatprep.subr.mxu0 0.0
    %1650 = vmatpush2.msra.mxu0 0.0
    %1651 = vmatprep.subr.mxu0 0.0
    %1652 = vmatpush2.msra.mxu0 0.0
    %1653 = vmatprep.subr.mxu0 0.0
    %1654 = vmatpush2.msra.mxu0 0.0
    %1655 = vmatprep.subr.mxu0 0.0
    %1656 = vmatpush2.msra.mxu0 0.0
    %1657 = vmatprep.subr.mxu0 0.0
    %1658 = vmatpush2.msra.mxu0 0.0
    %1659 = vmatprep.subr.mxu0 0.0
    %1660 = vmatpush2.msra.mxu0 0.0
    %1661 = vmatprep.subr.mxu0 0.0
    %1662 = vmatpush2.msra.mxu0 0.0
    %1663 = vmatprep.subr.mxu0 0.0
    %1664 = vmatpush2.msra.mxu0 0.0
    %1665 = vmatprep.subr.mxu0 0.0
    %1666 = vmatpush2.msra.mxu0 0.0
    %1667 = vmatprep.subr.mxu0 0.0
    %1668 = vmatpush2.msra.mxu0 0.0
    %1669 = vmatprep.subr.mxu0 0.0
    %1670 = vmatpush2.msra.mxu0 0.0
    %1671 = vmatprep.subr.mxu0 0.0
    %1672 = vmatpush2.msra.mxu0 0.0
    %1673 = vmatprep.subr.mxu0 0.0
    %1674 = vmatpush2.msra.mxu0 0.0
    %1675 = vmatprep.mubr.f32.mxu0 0.0
    %1676 = vmatmul.mubr.f32.gmra.mxu0 %v1609
    %v1677 = vpop.f32.mrf.mxu0
    %v1678 = vadd.f32 0.0, %v1677
    %v1679 = vpop.f32.mrf.mxu0
    %1680 = vdwg.mxu0
    %v1682 = vsel %vm962, %v1459, 0
    %1684 = vmatprep.subr.mxu0 0.0
    %1685 = vmatpush1.msra.mxu0 0.0
    %1686 = vmatprep.subr.mxu0 0.0
    %1687 = vmatpush1.msra.mxu0 0.0
    %1688 = vmatprep.subr.mxu0 0.0
    %1689 = vmatpush1.msra.mxu0 0.0
    %1690 = vmatprep.subr.mxu0 0.0
    %1691 = vmatpush1.msra.mxu0 0.0
    %1692 = vmatprep.subr.mxu0 0.0
    %1693 = vmatpush1.msra.mxu0 0.0
    %1694 = vmatprep.subr.mxu0 0.0
    %1695 = vmatpush1.msra.mxu0 0.0
    %1696 = vmatprep.subr.mxu0 0.0
    %1697 = vmatpush1.msra.mxu0 0.0
    %1698 = vmatprep.subr.mxu0 0.0
    %1699 = vmatpush1.msra.mxu0 0.0
    %1700 = vmatprep.subr.mxu0 0.0
    %1701 = vmatpush1.msra.mxu0 0.0
    %1702 = vmatprep.subr.mxu0 0.0
    %1703 = vmatpush1.msra.mxu0 0.0
    %1704 = vmatprep.subr.mxu0 0.0
    %1705 = vmatpush1.msra.mxu0 0.0
    %1706 = vmatprep.subr.mxu0 0.0
    %1707 = vmatpush1.msra.mxu0 0.0
    %1708 = vmatprep.subr.mxu0 0.0
    %1709 = vmatpush1.msra.mxu0 %v102
    %1710 = vmatprep.subr.mxu0 0.0
    %1711 = vmatpush1.msra.mxu0 %v101
    %1712 = vmatprep.subr.mxu0 0.0
    %1713 = vmatpush1.msra.mxu0 %v100
    %1714 = vmatprep.subr.mxu0 0.0
    %1715 = vmatpush1.msra.mxu0 %v99
    %1716 = vmatprep.subr.mxu0 0.0
    %1717 = vmatpush2.msra.mxu0 0.0
    %1718 = vmatprep.subr.mxu0 0.0
    %1719 = vmatpush2.msra.mxu0 0.0
    %1720 = vmatprep.subr.mxu0 0.0
    %1721 = vmatpush2.msra.mxu0 0.0
    %1722 = vmatprep.subr.mxu0 0.0
    %1723 = vmatpush2.msra.mxu0 0.0
    %1724 = vmatprep.subr.mxu0 0.0
    %1725 = vmatpush2.msra.mxu0 0.0
    %1726 = vmatprep.subr.mxu0 0.0
    %1727 = vmatpush2.msra.mxu0 0.0
    %1728 = vmatprep.subr.mxu0 0.0
    %1729 = vmatpush2.msra.mxu0 0.0
    %1730 = vmatprep.subr.mxu0 0.0
    %1731 = vmatpush2.msra.mxu0 0.0
    %1732 = vmatprep.subr.mxu0 0.0
    %1733 = vmatpush2.msra.mxu0 0.0
    %1734 = vmatprep.subr.mxu0 0.0
    %1735 = vmatpush2.msra.mxu0 0.0
    %1736 = vmatprep.subr.mxu0 0.0
    %1737 = vmatpush2.msra.mxu0 0.0
    %1738 = vmatprep.subr.mxu0 0.0
    %1739 = vmatpush2.msra.mxu0 0.0
    %1740 = vmatprep.subr.mxu0 0.0
    %1741 = vmatpush2.msra.mxu0 0.0
    %1742 = vmatprep.subr.mxu0 0.0
    %1743 = vmatpush2.msra.mxu0 0.0
    %1744 = vmatprep.subr.mxu0 0.0
    %1745 = vmatpush2.msra.mxu0 0.0
    %1746 = vmatprep.subr.mxu0 0.0
    %1747 = vmatpush2.msra.mxu0 0.0
    %1748 = vmatprep.mubr.f32.mxu0 0.0
    %1749 = vmatmul.mubr.f32.gmra.mxu0 %v1682
    %v1750 = vpop.f32.mrf.mxu0
    %v1751 = vadd.f32 0.0, %v1750
    %v1752 = vpop.f32.mrf.mxu0
    %1753 = vdwg.mxu0
    %v1755 = vsel %vm962, %v1532, 0
    %1757 = vmatprep.subr.mxu0 0.0
    %1758 = vmatpush1.msra.mxu0 0.0
    %1759 = vmatprep.subr.mxu0 0.0
    %1760 = vmatpush1.msra.mxu0 0.0
    %1761 = vmatprep.subr.mxu0 0.0
    %1762 = vmatpush1.msra.mxu0 0.0
    %1763 = vmatprep.subr.mxu0 0.0
    %1764 = vmatpush1.msra.mxu0 0.0
    %1765 = vmatprep.subr.mxu0 0.0
    %1766 = vmatpush1.msra.mxu0 0.0
    %1767 = vmatprep.subr.mxu0 0.0
    %1768 = vmatpush1.msra.mxu0 0.0
    %1769 = vmatprep.subr.mxu0 0.0
    %1770 = vmatpush1.msra.mxu0 0.0
    %1771 = vmatprep.subr.mxu0 0.0
    %1772 = vmatpush1.msra.mxu0 0.0
    %1773 = vmatprep.subr.mxu0 0.0
    %1774 = vmatpush1.msra.mxu0 0.0
    %1775 = vmatprep.subr.mxu0 0.0
    %1776 = vmatpush1.msra.mxu0 0.0
    %1777 = vmatprep.subr.mxu0 0.0
    %1778 = vmatpush1.msra.mxu0 0.0
    %1779 = vmatprep.subr.mxu0 0.0
    %1780 = vmatpush1.msra.mxu0 0.0
    %1781 = vmatprep.subr.mxu0 0.0
    %1782 = vmatpush1.msra.mxu0 %v98
    %1783 = vmatprep.subr.mxu0 0.0
    %1784 = vmatpush1.msra.mxu0 %v97
    %1785 = vmatprep.subr.mxu0 0.0
    %1786 = vmatpush1.msra.mxu0 %v96
    %1787 = vmatprep.subr.mxu0 0.0
    %1788 = vmatpush1.msra.mxu0 %v95
    %1789 = vmatprep.subr.mxu0 0.0
    %1790 = vmatpush2.msra.mxu0 0.0
    %1791 = vmatprep.subr.mxu0 0.0
    %1792 = vmatpush2.msra.mxu0 0.0
    %1793 = vmatprep.subr.mxu0 0.0
    %1794 = vmatpush2.msra.mxu0 0.0
    %1795 = vmatprep.subr.mxu0 0.0
    %1796 = vmatpush2.msra.mxu0 0.0
    %1797 = vmatprep.subr.mxu0 0.0
    %1798 = vmatpush2.msra.mxu0 0.0
    %1799 = vmatprep.subr.mxu0 0.0
    %1800 = vmatpush2.msra.mxu0 0.0
    %1801 = vmatprep.subr.mxu0 0.0
    %1802 = vmatpush2.msra.mxu0 0.0
    %1803 = vmatprep.subr.mxu0 0.0
    %1804 = vmatpush2.msra.mxu0 0.0
    %1805 = vmatprep.subr.mxu0 0.0
    %1806 = vmatpush2.msra.mxu0 0.0
    %1807 = vmatprep.subr.mxu0 0.0
    %1808 = vmatpush2.msra.mxu0 0.0
    %1809 = vmatprep.subr.mxu0 0.0
    %1810 = vmatpush2.msra.mxu0 0.0
    %1811 = vmatprep.subr.mxu0 0.0
    %1812 = vmatpush2.msra.mxu0 0.0
    %1813 = vmatprep.subr.mxu0 0.0
    %1814 = vmatpush2.msra.mxu0 0.0
    %1815 = vmatprep.subr.mxu0 0.0
    %1816 = vmatpush2.msra.mxu0 0.0
    %1817 = vmatprep.subr.mxu0 0.0
    %1818 = vmatpush2.msra.mxu0 0.0
    %1819 = vmatprep.subr.mxu0 0.0
    %1820 = vmatpush2.msra.mxu0 0.0
    %1821 = vmatprep.mubr.f32.mxu0 0.0
    %1822 = vmatmul.mubr.f32.gmra.mxu0 %v1755
    %v1823 = vpop.f32.mrf.mxu0
    %v1824 = vadd.f32 0.0, %v1823
    %v1825 = vpop.f32.mrf.mxu0
    %1826 = vdwg.mxu0
    %v1828 = vsel %vm962, %v1605, 0
    %1830 = vmatprep.subr.mxu0 0.0
    %1831 = vmatpush1.msra.mxu0 0.0
    %1832 = vmatprep.subr.mxu0 0.0
    %1833 = vmatpush1.msra.mxu0 0.0
    %1834 = vmatprep.subr.mxu0 0.0
    %1835 = vmatpush1.msra.mxu0 0.0
    %1836 = vmatprep.subr.mxu0 0.0
    %1837 = vmatpush1.msra.mxu0 0.0
    %1838 = vmatprep.subr.mxu0 0.0
    %1839 = vmatpush1.msra.mxu0 0.0
    %1840 = vmatprep.subr.mxu0 0.0
    %1841 = vmatpush1.msra.mxu0 0.0
    %1842 = vmatprep.subr.mxu0 0.0
    %1843 = vmatpush1.msra.mxu0 0.0
    %1844 = vmatprep.subr.mxu0 0.0
    %1845 = vmatpush1.msra.mxu0 0.0
    %1846 = vmatprep.subr.mxu0 0.0
    %1847 = vmatpush1.msra.mxu0 0.0
    %1848 = vmatprep.subr.mxu0 0.0
    %1849 = vmatpush1.msra.mxu0 0.0
    %1850 = vmatprep.subr.mxu0 0.0
    %1851 = vmatpush1.msra.mxu0 0.0
    %1852 = vmatprep.subr.mxu0 0.0
    %1853 = vmatpush1.msra.mxu0 0.0
    %1854 = vmatprep.subr.mxu0 0.0
    %1855 = vmatpush1.msra.mxu0 %v102
    %1856 = vmatprep.subr.mxu0 0.0
    %1857 = vmatpush1.msra.mxu0 %v101
    %1858 = vmatprep.subr.mxu0 0.0
    %1859 = vmatpush1.msra.mxu0 %v100
    %1860 = vmatprep.subr.mxu0 0.0
    %1861 = vmatpush1.msra.mxu0 %v99
    %1862 = vmatprep.subr.mxu0 0.0
    %1863 = vmatpush2.msra.mxu0 0.0
    %1864 = vmatprep.subr.mxu0 0.0
    %1865 = vmatpush2.msra.mxu0 0.0
    %1866 = vmatprep.subr.mxu0 0.0
    %1867 = vmatpush2.msra.mxu0 0.0
    %1868 = vmatprep.subr.mxu0 0.0
    %1869 = vmatpush2.msra.mxu0 0.0
    %1870 = vmatprep.subr.mxu0 0.0
    %1871 = vmatpush2.msra.mxu0 0.0
    %1872 = vmatprep.subr.mxu0 0.0
    %1873 = vmatpush2.msra.mxu0 0.0
    %1874 = vmatprep.subr.mxu0 0.0
    %1875 = vmatpush2.msra.mxu0 0.0
    %1876 = vmatprep.subr.mxu0 0.0
    %1877 = vmatpush2.msra.mxu0 0.0
    %1878 = vmatprep.subr.mxu0 0.0
    %1879 = vmatpush2.msra.mxu0 0.0
    %1880 = vmatprep.subr.mxu0 0.0
    %1881 = vmatpush2.msra.mxu0 0.0
    %1882 = vmatprep.subr.mxu0 0.0
    %1883 = vmatpush2.msra.mxu0 0.0
    %1884 = vmatprep.subr.mxu0 0.0
    %1885 = vmatpush2.msra.mxu0 0.0
    %1886 = vmatprep.subr.mxu0 0.0
    %1887 = vmatpush2.msra.mxu0 0.0
    %1888 = vmatprep.subr.mxu0 0.0
    %1889 = vmatpush2.msra.mxu0 0.0
    %1890 = vmatprep.subr.mxu0 0.0
    %1891 = vmatpush2.msra.mxu0 0.0
    %1892 = vmatprep.subr.mxu0 0.0
    %1893 = vmatpush2.msra.mxu0 0.0
    %1894 = vmatprep.mubr.f32.mxu0 0.0
    %1895 = vmatmul.mubr.f32.gmra.mxu0 %v1828
    %v1896 = vpop.f32.mrf.mxu0
    %v1897 = vadd.f32 0.0, %v1896
    %v1898 = vpop.f32.mrf.mxu0
    %1899 = vdwg.mxu0
    %v1900 = vsel %vm103, %v1678, 0.0
    %v1901 = vsel %vm103, %v1751, 0.0
    %v1902 = vadd.f32 %v1900, %v1901
    %v1903 = vsel %vm103, %v1824, 0.0
    %v1904 = vsel %vm103, %v1897, 0.0
    %v1905 = vadd.f32 %v1903, %v1904
    %v1906 = vadd.f32 %v1902, %v77
    %v1907 = vadd.f32 %v1905, %v78
    %v1908 = vsel %vm103, %v1906, 0.0
    %1909 = vadd.xlane.f32.xlu0 %v1908
    %v1910 = vpop.xlane.xlu0 %1909
    %v1911 = vsel %vm103, %v1907, 0.0
    %1912 = vadd.xlane.f32.xlu0 %v1911
    %v1913 = vpop.xlane.xlu0 %1912
    %v1914 = vrcp.pop 16.0
    %v1915 = vmul.f32 %v1910, %v1914
    %v1916 = vmul.f32 %v1913, %v1914
    %v1917 = vsub.f32 %v1906, %v1915
    %v1918 = vsub.f32 %v1907, %v1916
    %v1919 = vmul.f32 %v1917, %v1917
    %v1920 = vmul.f32 %v1918, %v1918
    %v1921 = vsel %vm103, %v1919, 0.0
    %1922 = vadd.xlane.f32.xlu0 %v1921
    %v1923 = vpop.xlane.xlu0 %1922
    %v1924 = vsel %vm103, %v1920, 0.0
    %1925 = vadd.xlane.f32.xlu0 %v1924
    %v1926 = vpop.xlane.xlu0 %1925
    %v1927 = vmul.f32 %v1923, %v1914
    %v1928 = vmul.f32 %v1926, %v1914
    %v1929 = vadd.f32 %v1927, 1e-06
    %v1930 = vadd.f32 %v1928, 1e-06
    %v1931 = vrsqrt.pop %v1929
    %v1932 = vrsqrt.pop %v1930
    %v1933 = vmul.f32 %v1917, %v1931
    %v1934 = vmul.f32 %v1918, %v1932
    %v1935 = vld [vmem:[%s7] sm:$0x1]
    %v1936 = vld [vmem:[%s8] sm:$0x1]
    %v1938 = vlaneseq
    %v1939 = vshrl.u32 %v1938, 7
    %v1940 = vsub.s32 0, %v1939
    %v1941 = vrot.slane %v1935, %v1940
    %v1943 = vmul.f32 %v1933, %v1941
    %v1944 = vmul.f32 %v1934, %v1941
    %v1946 = vlaneseq
    %v1947 = vshrl.u32 %v1946, 7
    %v1948 = vsub.s32 0, %v1947
    %v1949 = vrot.slane %v1936, %v1948
    %v1951 = vadd.f32 %v1943, %v1949
    %v1952 = vadd.f32 %v1944, %v1949
    %1953 = vst.msk [vmem:[#allocation8] sm:$0xff] %vm103, %v1951
    %1954 = vst.msk [vmem:[#allocation8 + $0x8] sm:$0xff] %vm103, %v1952
    // Predicated region
    $region50: #{tpu_custom_call.1} parent=1 // pred_check
      _
    $region51: #{tpu_custom_call.1} parent=1 // pred_check_branch
      %1956 = sbr.rel (0) target = $region53
    $region52: #{tpu_custom_call.1} parent=1 // pred_region
      %s1958 = ssub.s32 256, 256
      %1959 = vsyncadd [#allocation4], %s1958
      %s1960 = sshll.u32 [#allocation8], 4
      %s1961 = int_to_ptr.vmem [resolvable:$true] %s1960
      %1966 = dma.vmem_to_hbm [thread:$0]  %s1961, 256, %s9, [#allocation4], 128, 128, 8
    $region53: #{tpu_custom_call.1} parent=1 // pred_fallthru
      _
    // Predicated region
    $region54: #{tpu_custom_call.1} parent=1 // pred_check
      _
    $region55: #{tpu_custom_call.1} parent=1 // pred_check_branch
      %1968 = sbr.rel (0) target = $region57
    $region56: #{tpu_custom_call.1} parent=1 // pred_region
      %s1970 = ssub.s32 512, 512
      %1971 = vsyncadd [#allocation10], %s1970
      %s1972 = sshll.u32 [#allocation9], 4
      %s1973 = int_to_ptr.vmem [resolvable:$true] %s1972
      %1978 = dma.vmem_to_hbm [thread:$0]  %s1973, 512, %s10, [#allocation10], 128, 128, 8
    $region57: #{tpu_custom_call.1} parent=1 // pred_fallthru
      _
    // Predicated region
    $region58: #{tpu_custom_call.1} parent=1 // pred_check
      _
    $region59: #{tpu_custom_call.1} parent=1 // pred_check_branch
      %1980 = sbr.rel (0) target = $region61
    $region60: #{tpu_custom_call.1} parent=1 // pred_region
      %1981 = dma.done [#allocation4], 256
    $region61: #{tpu_custom_call.1} parent=1 // pred_fallthru
      _
    // Predicated region
    $region62: #{tpu_custom_call.1} parent=1 // pred_check
      _
    $region63: #{tpu_custom_call.1} parent=1 // pred_check_branch
      %1983 = sbr.rel (0) target = $region65
    $region64: #{tpu_custom_call.1} parent=1 // pred_region
      %1984 = dma.done [#allocation10], 512
    $region65: #{tpu_custom_call.1} parent=1 // pred_fallthru
      _
    %1985 = vsyncpa [#allocation3], 1
    %1986 = vsyncpa [#allocation6], 1
    %1987 = vsyncpa [#allocation4], 1
    %1988 = vsyncpa [#allocation10], 1

</llo_original>
